<compile_context>
chip_gen: v7x
topology: tpu7x:2x2x1
jax: 0.10.0
libtpu: 0.0.40
codegen_flags: <defaults>
</compile_context>

<pallas_src>
import functools

import jax
import jax.numpy as jnp
from jax.experimental import pallas as pl
from jax.experimental.pallas import tpu as pltpu


# ---------------------------------------------------------------------------
# Fused GRU kernel: one grid step == one (batch tile, time chunk)
# ---------------------------------------------------------------------------
def _gru_fused_chunk_kernel(x_ref, w_ih_ref, w_hh_ref, b_gi_ref, b_hn_ref,
                            c_ref, h_out_ref, gi_ref, h_carry_ref,
                            *, seq_len, matmul_dtype, unroll):
    """One grid step of the fused GRU.

    x_ref       : (B_TILE, T_CHUNK, D)   input chunk (streamed)
    w_ih_ref    : (D, 3H)                input weights, resident  (r|z|n)
    w_hh_ref    : (H, 3H)                hidden weights, resident (r|z|n)
    b_gi_ref    : (1, 3H) f32            b_ih with b_hh[:, :2H] folded in
    b_hn_ref    : (1, H)  f32            n-gate hidden bias (inside r*(...))
    c_ref       : (B_TILE, T_CHUNK, H)   output chunk
    h_out_ref   : (B_TILE, H) f32        final hidden state (written at last chunk)
    gi_ref      : (B_TILE, T_CHUNK, 3H) f32 VMEM scratch for the chunk projection
    h_carry_ref : (B_TILE, H) f32        carried hidden state across time chunks
    """
    tc = pl.program_id(1)
    n_tc = pl.num_programs(1)
    b_tile, t_chunk, d = x_ref.shape
    hidden = h_carry_ref.shape[-1]
    three_h = 3 * hidden

    # h0 = zeros at the start of every batch tile's time sweep (Autoregressor.init_hidden).
    @pl.when(tc == 0)
    def _():
        h_carry_ref[...] = jnp.zeros_like(h_carry_ref)

    # ---- fused input projection for this chunk: one large parallel MXU matmul ----
    x2 = x_ref[...].astype(matmul_dtype).reshape(b_tile * t_chunk, d)
    gi = jnp.dot(x2, w_ih_ref[...], preferred_element_type=jnp.float32)
    gi = gi + b_gi_ref[...]                              # broadcast (1, 3H)
    gi_ref[...] = gi.reshape(b_tile, t_chunk, three_h)

    w_hh = w_hh_ref[...]
    # Hoist the small bias broadcast out of the time loop.
    b_hn = jnp.broadcast_to(b_hn_ref[...], (b_tile, hidden)).astype(jnp.float32)

    ragged = (seq_len % t_chunk) != 0                    # static Python bool
    if ragged:
        valid_steps = jnp.minimum(t_chunk, seq_len - tc * t_chunk)

    def _sigmoid(v):
        # sigmoid(v) == 0.5 * (1 + tanh(v / 2)): one EUP op instead of exp + reciprocal.
        return 0.5 * (jnp.tanh(0.5 * v) + 1.0)

    def step(t, h):
        gi_t = gi_ref[:, t, :]                           # (B_TILE, 3H) f32
        gh = jnp.dot(h.astype(w_hh.dtype), w_hh,
                     preferred_element_type=jnp.float32)  # (B_TILE, 3H)
        r = _sigmoid(gi_t[:, :hidden] + gh[:, :hidden])
        z = _sigmoid(gi_t[:, hidden:2 * hidden] + gh[:, hidden:2 * hidden])
        n = jnp.tanh(gi_t[:, 2 * hidden:] + r * (gh[:, 2 * hidden:] + b_hn))
        h_new = (1.0 - z) * n + z * h
        c_ref[:, t, :] = h_new.astype(c_ref.dtype)
        if ragged:
            # Steps past the true sequence end: keep h frozen (their c rows are
            # out-of-bounds and masked by the pipeline writeback).
            h_new = jnp.where(t < valid_steps, h_new, h)
        return h_new

    h = h_carry_ref[...]
    if t_chunk < 32:
        # Small chunk: full static unroll, all indices static.
        for t in range(t_chunk):
            h = step(t, h)
    else:
        # Large chunk: moderate unroll bounds vreg pressure and compile time.
        h = jax.lax.fori_loop(0, t_chunk, step, h, unroll=unroll)
    h_carry_ref[...] = h

    @pl.when(tc == n_tc - 1)
    def _():
        h_out_ref[...] = h                               # f32, straight from the carry


# ---------------------------------------------------------------------------
# Wrapper: tiling / VMEM planning / pallas_call
# ---------------------------------------------------------------------------
def _pick_batch_tile(batch):
    """<=2 batch tiles: enough for v7x's 2 TensorCores, no extra grid overhead elsewhere."""
    if batch < 16:
        return batch, 1
    b_tile = ((batch + 1) // 2 + 7) // 8 * 8             # half the batch, multiple of 8
    return b_tile, pl.cdiv(batch, b_tile)


def _vmem_plan(b_tile, seq_len, d, hidden, x_bytes, c_bytes, m_bytes, time_chunk):
    """Derive t_chunk from a generation-aware VMEM byte budget; return (t_chunk, limit)."""
    try:
        vmem_cap = int(pltpu.get_tpu_info().vmem_capacity_bytes)
    except Exception:
        vmem_cap = 64 * 1024 * 1024                       # conservative fallback (v7x-sized)
    # ~45 MiB working set on 64 MiB v7x, ~90-100 MiB on 128 MiB v5e/v6e.
    budget = min(int(vmem_cap * 0.70), 100 * 1024 * 1024)

    three_h = 3 * hidden
    fixed = (2 * d * three_h * m_bytes                    # W_ih (double-buffer worst case)
             + 2 * hidden * three_h * m_bytes             # W_hh
             + 8 * 4 * hidden * 4                         # biases (sublane-padded)
             + 3 * b_tile * hidden * 4)                   # h carry + h_out buffers
    per_t = b_tile * (2 * d * x_bytes                     # x chunk, double buffered
                      + 2 * hidden * c_bytes              # c chunk, double buffered
                      + three_h * 4)                      # gi scratch (f32, single)

    if time_chunk is not None:
        t_chunk = min(int(time_chunk), seq_len)
    else:
        t_chunk = min(seq_len, max(8, (budget - fixed) // max(per_t, 1)))
    if t_chunk < seq_len and t_chunk % 8 != 0:
        t_chunk = max(8, (t_chunk // 8) * 8)              # (8, 128) rule on the time dim

    vmem_limit = min(vmem_cap,
                     max(32 * 1024 * 1024, fixed + per_t * t_chunk + (16 << 20)))
    return t_chunk, int(vmem_limit)


def autoregressor_forward(x, w_ih, w_hh, b_ih, b_hh, *,
                          matmul_dtype=jnp.float32, time_chunk=None):
    """x: (B, T, D).  Returns (c: (B, T, H) in x.dtype, h: (B, H) f32)."""
    batch, seq_len, d = x.shape
    hidden = w_hh.shape[0]
    three_h = 3 * hidden
    assert w_ih.shape == (d, three_h)
    assert w_hh.shape == (hidden, three_h)
    assert b_ih.shape == (1, three_h) and b_hh.shape == (1, three_h)

    c_dtype = x.dtype
    x_bytes = jnp.dtype(x.dtype).itemsize
    c_bytes = jnp.dtype(c_dtype).itemsize
    m_bytes = jnp.dtype(matmul_dtype).itemsize

    b_tile, grid_b = _pick_batch_tile(batch)
    t_chunk, vmem_limit = _vmem_plan(b_tile, seq_len, d, hidden,
                                     x_bytes, c_bytes, m_bytes, time_chunk)
    grid_t = pl.cdiv(seq_len, t_chunk)

    # Fold b_ih + b_hh[:, :2H] into one gi bias; only the n-gate hidden bias stays in-loop.
    b_gi = b_ih.astype(jnp.float32) + jnp.concatenate(
        [b_hh[:, :2 * hidden], jnp.zeros((1, hidden), b_hh.dtype)], axis=1
    ).astype(jnp.float32)
    b_hn = b_hh[:, 2 * hidden:].astype(jnp.float32)

    kernel = functools.partial(
        _gru_fused_chunk_kernel,
        seq_len=seq_len, matmul_dtype=matmul_dtype, unroll=8,
    )

    c, h = pl.pallas_call(
        kernel,
        out_shape=(
            jax.ShapeDtypeStruct((batch, seq_len, hidden), c_dtype),
            jax.ShapeDtypeStruct((batch, hidden), jnp.float32),
        ),
        grid_spec=pltpu.PrefetchScalarGridSpec(
            num_scalar_prefetch=0,
            grid=(grid_b, grid_t),
            in_specs=[
                pl.BlockSpec((b_tile, t_chunk, d), lambda b, t: (b, t, 0)),   # x chunk
                pl.BlockSpec((d, three_h), lambda b, t: (0, 0)),              # W_ih (resident)
                pl.BlockSpec((hidden, three_h), lambda b, t: (0, 0)),         # W_hh (resident)
                pl.BlockSpec((1, three_h), lambda b, t: (0, 0)),              # b_gi
                pl.BlockSpec((1, hidden), lambda b, t: (0, 0)),               # b_hn
            ],
            out_specs=[
                pl.BlockSpec((b_tile, t_chunk, hidden), lambda b, t: (b, t, 0)),  # c chunk
                pl.BlockSpec((b_tile, hidden), lambda b, t: (b, 0)),              # h
            ],
            scratch_shapes=[
                pltpu.VMEM((b_tile, t_chunk, three_h), jnp.float32),          # gi scratch
                pltpu.VMEM((b_tile, hidden), jnp.float32),                    # h carry
            ],
        ),
        compiler_params=pltpu.CompilerParams(
            dimension_semantics=("parallel", "arbitrary"),   # batch across cores, time serial
            vmem_limit_bytes=vmem_limit,
        ),
    )(x, w_ih.astype(matmul_dtype), w_hh.astype(matmul_dtype), b_gi, b_hn)

    return c, h


# ---------------------------------------------------------------------------
# Pure-JAX reference (PyTorch GRU equations, gate order r|z|n)
# ---------------------------------------------------------------------------
def gru_reference(x, w_ih, w_hh, b_ih, b_hh):
    batch, _, _ = x.shape
    hidden = w_hh.shape[0]

    def step(h, x_t):
        gi = x_t @ w_ih + b_ih
        gh = h @ w_hh + b_hh
        r = jax.nn.sigmoid(gi[:, :hidden] + gh[:, :hidden])
        z = jax.nn.sigmoid(gi[:, hidden:2 * hidden] + gh[:, hidden:2 * hidden])
        n = jnp.tanh(gi[:, 2 * hidden:] + r * gh[:, 2 * hidden:])
        h_new = (1.0 - z) * n + z * h
        return h_new, h_new

    h0 = jnp.zeros((batch, hidden), x.dtype)
    h_last, cs = jax.lax.scan(step, h0, jnp.transpose(x, (1, 0, 2)))
    return jnp.transpose(cs, (1, 0, 2)), h_last


if __name__ == "__main__":
    B, T, D, H = 2, 8, 16, 32  # batch, seq_len, input_dim, hidden_dim

    key = jax.random.PRNGKey(0)
    k_x, k_wih, k_whh, k_bih, k_bhh, k_x2 = jax.random.split(key, 6)

    bound = 1.0 / jnp.sqrt(jnp.float32(H))
    x = jax.random.normal(k_x, (B, T, D), dtype=jnp.float32)
    # Stored pre-transposed relative to PyTorch's (3H, D)/(3H, H) layout:
    w_ih = jax.random.uniform(k_wih, (D, 3 * H), jnp.float32, -bound, bound)
    w_hh = jax.random.uniform(k_whh, (H, 3 * H), jnp.float32, -bound, bound)
    b_ih = jax.random.uniform(k_bih, (1, 3 * H), jnp.float32, -bound, bound)
    b_hh = jax.random.uniform(k_bhh, (1, 3 * H), jnp.float32, -bound, bound)

    c_ref_out, h_ref_out = gru_reference(x, w_ih, w_hh, b_ih, b_hh)

    # f32 matmuls: tight check against the pure-JAX reference.
    c, h = autoregressor_forward(x, w_ih, w_hh, b_ih, b_hh)
    jax.block_until_ready((c, h))
    assert c.shape == (B, T, H) and h.shape == (B, H)
    assert jnp.allclose(c, c_ref_out, atol=1e-4, rtol=1e-4)
    assert jnp.allclose(h, h_ref_out, atol=1e-4, rtol=1e-4)

    # bf16 matmul operands (f32 accumulation / activations): loose check.
    c_bf, h_bf = autoregressor_forward(x, w_ih, w_hh, b_ih, b_hh,
                                       matmul_dtype=jnp.bfloat16)
    jax.block_until_ready((c_bf, h_bf))
    assert jnp.allclose(c_bf, c_ref_out, atol=5e-2, rtol=5e-2)
    assert jnp.allclose(h_bf, h_ref_out, atol=5e-2, rtol=5e-2)

    # Multi-chunk + ragged-T path: T=40 with forced t_chunk=16 -> 3 chunks, last one ragged.
    T2 = 40
    x2 = jax.random.normal(k_x2, (B, T2, D), dtype=jnp.float32)
    c2_ref, h2_ref = gru_reference(x2, w_ih, w_hh, b_ih, b_hh)
    c2, h2 = autoregressor_forward(x2, w_ih, w_hh, b_ih, b_hh, time_chunk=16)
    jax.block_until_ready((c2, h2))
    assert jnp.allclose(c2, c2_ref, atol=1e-4, rtol=1e-4)
    assert jnp.allclose(h2, h2_ref, atol=1e-4, rtol=1e-4)

    print("KERNEL_OK")
</pallas_src>

<mosaic_0001>
module attributes {stable_mosaic.version = 11 : i64} {
  func.func @_gru_fused_chunk_kernel(%arg0: i32, %arg1: i32, %arg2: memref<2x8x16xf32, #tpu.memory_space<vmem>>, %arg3: memref<16x96xf32, #tpu.memory_space<vmem>>, %arg4: memref<32x96xf32, #tpu.memory_space<vmem>>, %arg5: memref<1x96xf32, #tpu.memory_space<vmem>>, %arg6: memref<1x32xf32, #tpu.memory_space<vmem>>, %arg7: memref<2x8x32xf32, #tpu.memory_space<vmem>>, %arg8: memref<2x32xf32, #tpu.memory_space<vmem>>, %arg9: memref<2x8x96xf32, #tpu.memory_space<vmem>>, %arg10: memref<2x32xf32, #tpu.memory_space<vmem>>) attributes {dimension_semantics = [#tpu.dimension_semantics<parallel>, #tpu.dimension_semantics<arbitrary>], iteration_bounds = array<i64: 1, 1>, scalar_prefetch = 0 : i64, scratch_operands = 2 : i64, tpu.core_type = #tpu.core_type<tc>, window_params = [{transform_indices = @transform_0, window_bounds = array<i64: 2, 8, 16>}, {pipeline_mode = #tpu.pipeline_mode<synchronous>, transform_indices = @transform_1, window_bounds = array<i64: 16, 96>}, {pipeline_mode = #tpu.pipeline_mode<synchronous>, transform_indices = @transform_2, window_bounds = array<i64: 32, 96>}, {pipeline_mode = #tpu.pipeline_mode<synchronous>, transform_indices = @transform_3, window_bounds = array<i64: 1, 96>}, {pipeline_mode = #tpu.pipeline_mode<synchronous>, transform_indices = @transform_4, window_bounds = array<i64: 1, 32>}, {transform_indices = @transform_5, window_bounds = array<i64: 2, 8, 32>}, {transform_indices = @transform_6, window_bounds = array<i64: 2, 32>}]} {
    %c0_i32 = arith.constant 0 : i32
    %0 = arith.cmpi eq, %arg1, %c0_i32 : i32
    %1 = arith.extui %0 : i1 to i32
    %c0_i32_0 = arith.constant 0 : i32
    %2 = arith.cmpi ne, %1, %c0_i32_0 : i32
    scf.if %2 {
      %cst_125 = arith.constant 0.000000e+00 : f32
      %317 = vector.broadcast %cst_125 : f32 to vector<2x32xf32>
      %c0_126 = arith.constant 0 : index
      %c0_127 = arith.constant 0 : index
      %318 = vector.load %arg10[%c0_126, %c0_127] : memref<2x32xf32, #tpu.memory_space<vmem>>, vector<2x32xf32>
      tpu.vector_store %arg10[%c0_126, %c0_127], %317 {strides = array<i32>} : memref<2x32xf32, #tpu.memory_space<vmem>>, vector<2x32xf32>,
    } else {
    }
    %c0 = arith.constant 0 : index
    %c0_1 = arith.constant 0 : index
    %c0_2 = arith.constant 0 : index
    %3 = vector.load %arg2[%c0, %c0_1, %c0_2] : memref<2x8x16xf32, #tpu.memory_space<vmem>>, vector<2x8x16xf32>
    %4 = vector.shape_cast %3 : vector<2x8x16xf32> to vector<16x16xf32>
    %c0_3 = arith.constant 0 : index
    %c0_4 = arith.constant 0 : index
    %5 = vector.load %arg3[%c0_3, %c0_4] : memref<16x96xf32, #tpu.memory_space<vmem>>, vector<16x96xf32>
    %cst = arith.constant dense<0.000000e+00> : vector<16x96xf32>
    %6 = tpu.matmul %4, %5, %cst {dimension_numbers = #tpu.dot_dimension_numbers<[1], [0], [0], [1], [0, 0, 1, 1], [], []>} : vector<16x16xf32>, vector<16x96xf32>, vector<16x96xf32> -> vector<16x96xf32>
    %c0_5 = arith.constant 0 : index
    %c0_6 = arith.constant 0 : index
    %7 = vector.load %arg5[%c0_5, %c0_6] : memref<1x96xf32, #tpu.memory_space<vmem>>, vector<1x96xf32>
    %8 = vector.broadcast %7 : vector<1x96xf32> to vector<16x96xf32>
    %9 = arith.addf %6, %8 : vector<16x96xf32>
    %10 = vector.shape_cast %9 : vector<16x96xf32> to vector<2x8x96xf32>
    %c0_7 = arith.constant 0 : index
    %c0_8 = arith.constant 0 : index
    %c0_9 = arith.constant 0 : index
    %11 = vector.load %arg9[%c0_7, %c0_8, %c0_9] : memref<2x8x96xf32, #tpu.memory_space<vmem>>, vector<2x8x96xf32>
    tpu.vector_store %arg9[%c0_7, %c0_8, %c0_9], %10 {strides = array<i32>} : memref<2x8x96xf32, #tpu.memory_space<vmem>>, vector<2x8x96xf32>,
    %c0_10 = arith.constant 0 : index
    %c0_11 = arith.constant 0 : index
    %12 = vector.load %arg4[%c0_10, %c0_11] : memref<32x96xf32, #tpu.memory_space<vmem>>, vector<32x96xf32>
    %c0_12 = arith.constant 0 : index
    %c0_13 = arith.constant 0 : index
    %13 = vector.load %arg6[%c0_12, %c0_13] : memref<1x32xf32, #tpu.memory_space<vmem>>, vector<1x32xf32>
    %14 = vector.shape_cast %13 : vector<1x32xf32> to vector<1x32xf32>
    %15 = vector.broadcast %14 : vector<1x32xf32> to vector<2x32xf32>
    %c0_14 = arith.constant 0 : index
    %c0_15 = arith.constant 0 : index
    %16 = vector.load %arg10[%c0_14, %c0_15] : memref<2x32xf32, #tpu.memory_space<vmem>>, vector<2x32xf32>
    %c0_16 = arith.constant 0 : index
    %c0_17 = arith.constant 0 : index
    %c0_18 = arith.constant 0 : index
    %17 = vector.load %arg9[%c0_16, %c0_17, %c0_18] : memref<2x8x96xf32, #tpu.memory_space<vmem>>, vector<2x1x96xf32>
    %18 = vector.shape_cast %17 : vector<2x1x96xf32> to vector<2x96xf32>
    %cst_19 = arith.constant dense<0.000000e+00> : vector<2x96xf32>
    %19 = tpu.matmul %16, %12, %cst_19 {dimension_numbers = #tpu.dot_dimension_numbers<[1], [0], [0], [1], [0, 0, 1, 1], [], []>} : vector<2x32xf32>, vector<32x96xf32>, vector<2x96xf32> -> vector<2x96xf32>
    %20 = vector.extract_strided_slice %18 {offsets = [0, 0], sizes = [2, 32], strides = [1, 1]} : vector<2x96xf32> to vector<2x32xf32>
    %21 = vector.extract_strided_slice %19 {offsets = [0, 0], sizes = [2, 32], strides = [1, 1]} : vector<2x96xf32> to vector<2x32xf32>
    %22 = arith.addf %20, %21 : vector<2x32xf32>
    %cst_20 = arith.constant 5.000000e-01 : f32
    %23 = vector.broadcast %cst_20 : f32 to vector<2x32xf32>
    %24 = arith.mulf %23, %22 : vector<2x32xf32>
    %25 = math.tanh %24 : vector<2x32xf32>
    %cst_21 = arith.constant 1.000000e+00 : f32
    %26 = vector.broadcast %cst_21 : f32 to vector<2x32xf32>
    %27 = arith.addf %25, %26 : vector<2x32xf32>
    %cst_22 = arith.constant 5.000000e-01 : f32
    %28 = vector.broadcast %cst_22 : f32 to vector<2x32xf32>
    %29 = arith.mulf %28, %27 : vector<2x32xf32>
    %30 = vector.extract_strided_slice %18 {offsets = [0, 32], sizes = [2, 32], strides = [1, 1]} : vector<2x96xf32> to vector<2x32xf32>
    %31 = vector.extract_strided_slice %19 {offsets = [0, 32], sizes = [2, 32], strides = [1, 1]} : vector<2x96xf32> to vector<2x32xf32>
    %32 = arith.addf %30, %31 : vector<2x32xf32>
    %cst_23 = arith.constant 5.000000e-01 : f32
    %33 = vector.broadcast %cst_23 : f32 to vector<2x32xf32>
    %34 = arith.mulf %33, %32 : vector<2x32xf32>
    %35 = math.tanh %34 : vector<2x32xf32>
    %cst_24 = arith.constant 1.000000e+00 : f32
    %36 = vector.broadcast %cst_24 : f32 to vector<2x32xf32>
    %37 = arith.addf %35, %36 : vector<2x32xf32>
    %cst_25 = arith.constant 5.000000e-01 : f32
    %38 = vector.broadcast %cst_25 : f32 to vector<2x32xf32>
    %39 = arith.mulf %38, %37 : vector<2x32xf32>
    %40 = vector.extract_strided_slice %18 {offsets = [0, 64], sizes = [2, 32], strides = [1, 1]} : vector<2x96xf32> to vector<2x32xf32>
    %41 = vector.extract_strided_slice %19 {offsets = [0, 64], sizes = [2, 32], strides = [1, 1]} : vector<2x96xf32> to vector<2x32xf32>
    %42 = arith.addf %41, %15 : vector<2x32xf32>
    %43 = arith.mulf %29, %42 : vector<2x32xf32>
    %44 = arith.addf %40, %43 : vector<2x32xf32>
    %45 = math.tanh %44 : vector<2x32xf32>
    %cst_26 = arith.constant 1.000000e+00 : f32
    %46 = vector.broadcast %cst_26 : f32 to vector<2x32xf32>
    %47 = arith.subf %46, %39 : vector<2x32xf32>
    %48 = arith.mulf %47, %45 : vector<2x32xf32>
    %49 = arith.mulf %39, %16 : vector<2x32xf32>
    %50 = arith.addf %48, %49 : vector<2x32xf32>
    %c0_27 = arith.constant 0 : index
    %c0_28 = arith.constant 0 : index
    %c0_29 = arith.constant 0 : index
    %51 = vector.load %arg7[%c0_27, %c0_28, %c0_29] : memref<2x8x32xf32, #tpu.memory_space<vmem>>, vector<2x1x32xf32>
    %52 = vector.shape_cast %51 : vector<2x1x32xf32> to vector<2x32xf32>
    %53 = vector.shape_cast %50 : vector<2x32xf32> to vector<2x1x32xf32>
    tpu.vector_store %arg7[%c0_27, %c0_28, %c0_29], %53 {strides = array<i32>} : memref<2x8x32xf32, #tpu.memory_space<vmem>>, vector<2x1x32xf32>,
    %c0_30 = arith.constant 0 : index
    %c1 = arith.constant 1 : index
    %c0_31 = arith.constant 0 : index
    %54 = vector.load %arg9[%c0_30, %c1, %c0_31] : memref<2x8x96xf32, #tpu.memory_space<vmem>>, vector<2x1x96xf32>
    %55 = vector.shape_cast %54 : vector<2x1x96xf32> to vector<2x96xf32>
    %cst_32 = arith.constant dense<0.000000e+00> : vector<2x96xf32>
    %56 = tpu.matmul %50, %12, %cst_32 {dimension_numbers = #tpu.dot_dimension_numbers<[1], [0], [0], [1], [0, 0, 1, 1], [], []>} : vector<2x32xf32>, vector<32x96xf32>, vector<2x96xf32> -> vector<2x96xf32>
    %57 = vector.extract_strided_slice %55 {offsets = [0, 0], sizes = [2, 32], strides = [1, 1]} : vector<2x96xf32> to vector<2x32xf32>
    %58 = vector.extract_strided_slice %56 {offsets = [0, 0], sizes = [2, 32], strides = [1, 1]} : vector<2x96xf32> to vector<2x32xf32>
    %59 = arith.addf %57, %58 : vector<2x32xf32>
    %cst_33 = arith.constant 5.000000e-01 : f32
    %60 = vector.broadcast %cst_33 : f32 to vector<2x32xf32>
    %61 = arith.mulf %60, %59 : vector<2x32xf32>
    %62 = math.tanh %61 : vector<2x32xf32>
    %cst_34 = arith.constant 1.000000e+00 : f32
    %63 = vector.broadcast %cst_34 : f32 to vector<2x32xf32>
    %64 = arith.addf %62, %63 : vector<2x32xf32>
    %cst_35 = arith.constant 5.000000e-01 : f32
    %65 = vector.broadcast %cst_35 : f32 to vector<2x32xf32>
    %66 = arith.mulf %65, %64 : vector<2x32xf32>
    %67 = vector.extract_strided_slice %55 {offsets = [0, 32], sizes = [2, 32], strides = [1, 1]} : vector<2x96xf32> to vector<2x32xf32>
    %68 = vector.extract_strided_slice %56 {offsets = [0, 32], sizes = [2, 32], strides = [1, 1]} : vector<2x96xf32> to vector<2x32xf32>
    %69 = arith.addf %67, %68 : vector<2x32xf32>
    %cst_36 = arith.constant 5.000000e-01 : f32
    %70 = vector.broadcast %cst_36 : f32 to vector<2x32xf32>
    %71 = arith.mulf %70, %69 : vector<2x32xf32>
    %72 = math.tanh %71 : vector<2x32xf32>
    %cst_37 = arith.constant 1.000000e+00 : f32
    %73 = vector.broadcast %cst_37 : f32 to vector<2x32xf32>
    %74 = arith.addf %72, %73 : vector<2x32xf32>
    %cst_38 = arith.constant 5.000000e-01 : f32
    %75 = vector.broadcast %cst_38 : f32 to vector<2x32xf32>
    %76 = arith.mulf %75, %74 : vector<2x32xf32>
    %77 = vector.extract_strided_slice %55 {offsets = [0, 64], sizes = [2, 32], strides = [1, 1]} : vector<2x96xf32> to vector<2x32xf32>
    %78 = vector.extract_strided_slice %56 {offsets = [0, 64], sizes = [2, 32], strides = [1, 1]} : vector<2x96xf32> to vector<2x32xf32>
    %79 = arith.addf %78, %15 : vector<2x32xf32>
    %80 = arith.mulf %66, %79 : vector<2x32xf32>
    %81 = arith.addf %77, %80 : vector<2x32xf32>
    %82 = math.tanh %81 : vector<2x32xf32>
    %cst_39 = arith.constant 1.000000e+00 : f32
    %83 = vector.broadcast %cst_39 : f32 to vector<2x32xf32>
    %84 = arith.subf %83, %76 : vector<2x32xf32>
    %85 = arith.mulf %84, %82 : vector<2x32xf32>
    %86 = arith.mulf %76, %50 : vector<2x32xf32>
    %87 = arith.addf %85, %86 : vector<2x32xf32>
    %c0_40 = arith.constant 0 : index
    %c1_41 = arith.constant 1 : index
    %c0_42 = arith.constant 0 : index
    %88 = vector.load %arg7[%c0_40, %c1_41, %c0_42] : memref<2x8x32xf32, #tpu.memory_space<vmem>>, vector<2x1x32xf32>
    %89 = vector.shape_cast %88 : vector<2x1x32xf32> to vector<2x32xf32>
    %90 = vector.shape_cast %87 : vector<2x32xf32> to vector<2x1x32xf32>
    tpu.vector_store %arg7[%c0_40, %c1_41, %c0_42], %90 {strides = array<i32>} : memref<2x8x32xf32, #tpu.memory_space<vmem>>, vector<2x1x32xf32>,
    %c0_43 = arith.constant 0 : index
    %c2 = arith.constant 2 : index
    %c0_44 = arith.constant 0 : index
    %91 = vector.load %arg9[%c0_43, %c2, %c0_44] : memref<2x8x96xf32, #tpu.memory_space<vmem>>, vector<2x1x96xf32>
    %92 = vector.shape_cast %91 : vector<2x1x96xf32> to vector<2x96xf32>
    %cst_45 = arith.constant dense<0.000000e+00> : vector<2x96xf32>
    %93 = tpu.matmul %87, %12, %cst_45 {dimension_numbers = #tpu.dot_dimension_numbers<[1], [0], [0], [1], [0, 0, 1, 1], [], []>} : vector<2x32xf32>, vector<32x96xf32>, vector<2x96xf32> -> vector<2x96xf32>
    %94 = vector.extract_strided_slice %92 {offsets = [0, 0], sizes = [2, 32], strides = [1, 1]} : vector<2x96xf32> to vector<2x32xf32>
    %95 = vector.extract_strided_slice %93 {offsets = [0, 0], sizes = [2, 32], strides = [1, 1]} : vector<2x96xf32> to vector<2x32xf32>
    %96 = arith.addf %94, %95 : vector<2x32xf32>
    %cst_46 = arith.constant 5.000000e-01 : f32
    %97 = vector.broadcast %cst_46 : f32 to vector<2x32xf32>
    %98 = arith.mulf %97, %96 : vector<2x32xf32>
    %99 = math.tanh %98 : vector<2x32xf32>
    %cst_47 = arith.constant 1.000000e+00 : f32
    %100 = vector.broadcast %cst_47 : f32 to vector<2x32xf32>
    %101 = arith.addf %99, %100 : vector<2x32xf32>
    %cst_48 = arith.constant 5.000000e-01 : f32
    %102 = vector.broadcast %cst_48 : f32 to vector<2x32xf32>
    %103 = arith.mulf %102, %101 : vector<2x32xf32>
    %104 = vector.extract_strided_slice %92 {offsets = [0, 32], sizes = [2, 32], strides = [1, 1]} : vector<2x96xf32> to vector<2x32xf32>
    %105 = vector.extract_strided_slice %93 {offsets = [0, 32], sizes = [2, 32], strides = [1, 1]} : vector<2x96xf32> to vector<2x32xf32>
    %106 = arith.addf %104, %105 : vector<2x32xf32>
    %cst_49 = arith.constant 5.000000e-01 : f32
    %107 = vector.broadcast %cst_49 : f32 to vector<2x32xf32>
    %108 = arith.mulf %107, %106 : vector<2x32xf32>
    %109 = math.tanh %108 : vector<2x32xf32>
    %cst_50 = arith.constant 1.000000e+00 : f32
    %110 = vector.broadcast %cst_50 : f32 to vector<2x32xf32>
    %111 = arith.addf %109, %110 : vector<2x32xf32>
    %cst_51 = arith.constant 5.000000e-01 : f32
    %112 = vector.broadcast %cst_51 : f32 to vector<2x32xf32>
    %113 = arith.mulf %112, %111 : vector<2x32xf32>
    %114 = vector.extract_strided_slice %92 {offsets = [0, 64], sizes = [2, 32], strides = [1, 1]} : vector<2x96xf32> to vector<2x32xf32>
    %115 = vector.extract_strided_slice %93 {offsets = [0, 64], sizes = [2, 32], strides = [1, 1]} : vector<2x96xf32> to vector<2x32xf32>
    %116 = arith.addf %115, %15 : vector<2x32xf32>
    %117 = arith.mulf %103, %116 : vector<2x32xf32>
    %118 = arith.addf %114, %117 : vector<2x32xf32>
    %119 = math.tanh %118 : vector<2x32xf32>
    %cst_52 = arith.constant 1.000000e+00 : f32
    %120 = vector.broadcast %cst_52 : f32 to vector<2x32xf32>
    %121 = arith.subf %120, %113 : vector<2x32xf32>
    %122 = arith.mulf %121, %119 : vector<2x32xf32>
    %123 = arith.mulf %113, %87 : vector<2x32xf32>
    %124 = arith.addf %122, %123 : vector<2x32xf32>
    %c0_53 = arith.constant 0 : index
    %c2_54 = arith.constant 2 : index
    %c0_55 = arith.constant 0 : index
    %125 = vector.load %arg7[%c0_53, %c2_54, %c0_55] : memref<2x8x32xf32, #tpu.memory_space<vmem>>, vector<2x1x32xf32>
    %126 = vector.shape_cast %125 : vector<2x1x32xf32> to vector<2x32xf32>
    %127 = vector.shape_cast %124 : vector<2x32xf32> to vector<2x1x32xf32>
    tpu.vector_store %arg7[%c0_53, %c2_54, %c0_55], %127 {strides = array<i32>} : memref<2x8x32xf32, #tpu.memory_space<vmem>>, vector<2x1x32xf32>,
    %c0_56 = arith.constant 0 : index
    %c3 = arith.constant 3 : index
    %c0_57 = arith.constant 0 : index
    %128 = vector.load %arg9[%c0_56, %c3, %c0_57] : memref<2x8x96xf32, #tpu.memory_space<vmem>>, vector<2x1x96xf32>
    %129 = vector.shape_cast %128 : vector<2x1x96xf32> to vector<2x96xf32>
    %cst_58 = arith.constant dense<0.000000e+00> : vector<2x96xf32>
    %130 = tpu.matmul %124, %12, %cst_58 {dimension_numbers = #tpu.dot_dimension_numbers<[1], [0], [0], [1], [0, 0, 1, 1], [], []>} : vector<2x32xf32>, vector<32x96xf32>, vector<2x96xf32> -> vector<2x96xf32>
    %131 = vector.extract_strided_slice %129 {offsets = [0, 0], sizes = [2, 32], strides = [1, 1]} : vector<2x96xf32> to vector<2x32xf32>
    %132 = vector.extract_strided_slice %130 {offsets = [0, 0], sizes = [2, 32], strides = [1, 1]} : vector<2x96xf32> to vector<2x32xf32>
    %133 = arith.addf %131, %132 : vector<2x32xf32>
    %cst_59 = arith.constant 5.000000e-01 : f32
    %134 = vector.broadcast %cst_59 : f32 to vector<2x32xf32>
    %135 = arith.mulf %134, %133 : vector<2x32xf32>
    %136 = math.tanh %135 : vector<2x32xf32>
    %cst_60 = arith.constant 1.000000e+00 : f32
    %137 = vector.broadcast %cst_60 : f32 to vector<2x32xf32>
    %138 = arith.addf %136, %137 : vector<2x32xf32>
    %cst_61 = arith.constant 5.000000e-01 : f32
    %139 = vector.broadcast %cst_61 : f32 to vector<2x32xf32>
    %140 = arith.mulf %139, %138 : vector<2x32xf32>
    %141 = vector.extract_strided_slice %129 {offsets = [0, 32], sizes = [2, 32], strides = [1, 1]} : vector<2x96xf32> to vector<2x32xf32>
    %142 = vector.extract_strided_slice %130 {offsets = [0, 32], sizes = [2, 32], strides = [1, 1]} : vector<2x96xf32> to vector<2x32xf32>
    %143 = arith.addf %141, %142 : vector<2x32xf32>
    %cst_62 = arith.constant 5.000000e-01 : f32
    %144 = vector.broadcast %cst_62 : f32 to vector<2x32xf32>
    %145 = arith.mulf %144, %143 : vector<2x32xf32>
    %146 = math.tanh %145 : vector<2x32xf32>
    %cst_63 = arith.constant 1.000000e+00 : f32
    %147 = vector.broadcast %cst_63 : f32 to vector<2x32xf32>
    %148 = arith.addf %146, %147 : vector<2x32xf32>
    %cst_64 = arith.constant 5.000000e-01 : f32
    %149 = vector.broadcast %cst_64 : f32 to vector<2x32xf32>
    %150 = arith.mulf %149, %148 : vector<2x32xf32>
    %151 = vector.extract_strided_slice %129 {offsets = [0, 64], sizes = [2, 32], strides = [1, 1]} : vector<2x96xf32> to vector<2x32xf32>
    %152 = vector.extract_strided_slice %130 {offsets = [0, 64], sizes = [2, 32], strides = [1, 1]} : vector<2x96xf32> to vector<2x32xf32>
    %153 = arith.addf %152, %15 : vector<2x32xf32>
    %154 = arith.mulf %140, %153 : vector<2x32xf32>
    %155 = arith.addf %151, %154 : vector<2x32xf32>
    %156 = math.tanh %155 : vector<2x32xf32>
    %cst_65 = arith.constant 1.000000e+00 : f32
    %157 = vector.broadcast %cst_65 : f32 to vector<2x32xf32>
    %158 = arith.subf %157, %150 : vector<2x32xf32>
    %159 = arith.mulf %158, %156 : vector<2x32xf32>
    %160 = arith.mulf %150, %124 : vector<2x32xf32>
    %161 = arith.addf %159, %160 : vector<2x32xf32>
    %c0_66 = arith.constant 0 : index
    %c3_67 = arith.constant 3 : index
    %c0_68 = arith.constant 0 : index
    %162 = vector.load %arg7[%c0_66, %c3_67, %c0_68] : memref<2x8x32xf32, #tpu.memory_space<vmem>>, vector<2x1x32xf32>
    %163 = vector.shape_cast %162 : vector<2x1x32xf32> to vector<2x32xf32>
    %164 = vector.shape_cast %161 : vector<2x32xf32> to vector<2x1x32xf32>
    tpu.vector_store %arg7[%c0_66, %c3_67, %c0_68], %164 {strides = array<i32>} : memref<2x8x32xf32, #tpu.memory_space<vmem>>, vector<2x1x32xf32>,
    %c0_69 = arith.constant 0 : index
    %c4 = arith.constant 4 : index
    %c0_70 = arith.constant 0 : index
    %165 = vector.load %arg9[%c0_69, %c4, %c0_70] : memref<2x8x96xf32, #tpu.memory_space<vmem>>, vector<2x1x96xf32>
    %166 = vector.shape_cast %165 : vector<2x1x96xf32> to vector<2x96xf32>
    %cst_71 = arith.constant dense<0.000000e+00> : vector<2x96xf32>
    %167 = tpu.matmul %161, %12, %cst_71 {dimension_numbers = #tpu.dot_dimension_numbers<[1], [0], [0], [1], [0, 0, 1, 1], [], []>} : vector<2x32xf32>, vector<32x96xf32>, vector<2x96xf32> -> vector<2x96xf32>
    %168 = vector.extract_strided_slice %166 {offsets = [0, 0], sizes = [2, 32], strides = [1, 1]} : vector<2x96xf32> to vector<2x32xf32>
    %169 = vector.extract_strided_slice %167 {offsets = [0, 0], sizes = [2, 32], strides = [1, 1]} : vector<2x96xf32> to vector<2x32xf32>
    %170 = arith.addf %168, %169 : vector<2x32xf32>
    %cst_72 = arith.constant 5.000000e-01 : f32
    %171 = vector.broadcast %cst_72 : f32 to vector<2x32xf32>
    %172 = arith.mulf %171, %170 : vector<2x32xf32>
    %173 = math.tanh %172 : vector<2x32xf32>
    %cst_73 = arith.constant 1.000000e+00 : f32
    %174 = vector.broadcast %cst_73 : f32 to vector<2x32xf32>
    %175 = arith.addf %173, %174 : vector<2x32xf32>
    %cst_74 = arith.constant 5.000000e-01 : f32
    %176 = vector.broadcast %cst_74 : f32 to vector<2x32xf32>
    %177 = arith.mulf %176, %175 : vector<2x32xf32>
    %178 = vector.extract_strided_slice %166 {offsets = [0, 32], sizes = [2, 32], strides = [1, 1]} : vector<2x96xf32> to vector<2x32xf32>
    %179 = vector.extract_strided_slice %167 {offsets = [0, 32], sizes = [2, 32], strides = [1, 1]} : vector<2x96xf32> to vector<2x32xf32>
    %180 = arith.addf %178, %179 : vector<2x32xf32>
    %cst_75 = arith.constant 5.000000e-01 : f32
    %181 = vector.broadcast %cst_75 : f32 to vector<2x32xf32>
    %182 = arith.mulf %181, %180 : vector<2x32xf32>
    %183 = math.tanh %182 : vector<2x32xf32>
    %cst_76 = arith.constant 1.000000e+00 : f32
    %184 = vector.broadcast %cst_76 : f32 to vector<2x32xf32>
    %185 = arith.addf %183, %184 : vector<2x32xf32>
    %cst_77 = arith.constant 5.000000e-01 : f32
    %186 = vector.broadcast %cst_77 : f32 to vector<2x32xf32>
    %187 = arith.mulf %186, %185 : vector<2x32xf32>
    %188 = vector.extract_strided_slice %166 {offsets = [0, 64], sizes = [2, 32], strides = [1, 1]} : vector<2x96xf32> to vector<2x32xf32>
    %189 = vector.extract_strided_slice %167 {offsets = [0, 64], sizes = [2, 32], strides = [1, 1]} : vector<2x96xf32> to vector<2x32xf32>
    %190 = arith.addf %189, %15 : vector<2x32xf32>
    %191 = arith.mulf %177, %190 : vector<2x32xf32>
    %192 = arith.addf %188, %191 : vector<2x32xf32>
    %193 = math.tanh %192 : vector<2x32xf32>
    %cst_78 = arith.constant 1.000000e+00 : f32
    %194 = vector.broadcast %cst_78 : f32 to vector<2x32xf32>
    %195 = arith.subf %194, %187 : vector<2x32xf32>
    %196 = arith.mulf %195, %193 : vector<2x32xf32>
    %197 = arith.mulf %187, %161 : vector<2x32xf32>
    %198 = arith.addf %196, %197 : vector<2x32xf32>
    %c0_79 = arith.constant 0 : index
    %c4_80 = arith.constant 4 : index
    %c0_81 = arith.constant 0 : index
    %199 = vector.load %arg7[%c0_79, %c4_80, %c0_81] : memref<2x8x32xf32, #tpu.memory_space<vmem>>, vector<2x1x32xf32>
    %200 = vector.shape_cast %199 : vector<2x1x32xf32> to vector<2x32xf32>
    %201 = vector.shape_cast %198 : vector<2x32xf32> to vector<2x1x32xf32>
    tpu.vector_store %arg7[%c0_79, %c4_80, %c0_81], %201 {strides = array<i32>} : memref<2x8x32xf32, #tpu.memory_space<vmem>>, vector<2x1x32xf32>,
    %c0_82 = arith.constant 0 : index
    %c5 = arith.constant 5 : index
    %c0_83 = arith.constant 0 : index
    %202 = vector.load %arg9[%c0_82, %c5, %c0_83] : memref<2x8x96xf32, #tpu.memory_space<vmem>>, vector<2x1x96xf32>
    %203 = vector.shape_cast %202 : vector<2x1x96xf32> to vector<2x96xf32>
    %cst_84 = arith.constant dense<0.000000e+00> : vector<2x96xf32>
    %204 = tpu.matmul %198, %12, %cst_84 {dimension_numbers = #tpu.dot_dimension_numbers<[1], [0], [0], [1], [0, 0, 1, 1], [], []>} : vector<2x32xf32>, vector<32x96xf32>, vector<2x96xf32> -> vector<2x96xf32>
    %205 = vector.extract_strided_slice %203 {offsets = [0, 0], sizes = [2, 32], strides = [1, 1]} : vector<2x96xf32> to vector<2x32xf32>
    %206 = vector.extract_strided_slice %204 {offsets = [0, 0], sizes = [2, 32], strides = [1, 1]} : vector<2x96xf32> to vector<2x32xf32>
    %207 = arith.addf %205, %206 : vector<2x32xf32>
    %cst_85 = arith.constant 5.000000e-01 : f32
    %208 = vector.broadcast %cst_85 : f32 to vector<2x32xf32>
    %209 = arith.mulf %208, %207 : vector<2x32xf32>
    %210 = math.tanh %209 : vector<2x32xf32>
    %cst_86 = arith.constant 1.000000e+00 : f32
    %211 = vector.broadcast %cst_86 : f32 to vector<2x32xf32>
    %212 = arith.addf %210, %211 : vector<2x32xf32>
    %cst_87 = arith.constant 5.000000e-01 : f32
    %213 = vector.broadcast %cst_87 : f32 to vector<2x32xf32>
    %214 = arith.mulf %213, %212 : vector<2x32xf32>
    %215 = vector.extract_strided_slice %203 {offsets = [0, 32], sizes = [2, 32], strides = [1, 1]} : vector<2x96xf32> to vector<2x32xf32>
    %216 = vector.extract_strided_slice %204 {offsets = [0, 32], sizes = [2, 32], strides = [1, 1]} : vector<2x96xf32> to vector<2x32xf32>
    %217 = arith.addf %215, %216 : vector<2x32xf32>
    %cst_88 = arith.constant 5.000000e-01 : f32
    %218 = vector.broadcast %cst_88 : f32 to vector<2x32xf32>
    %219 = arith.mulf %218, %217 : vector<2x32xf32>
    %220 = math.tanh %219 : vector<2x32xf32>
    %cst_89 = arith.constant 1.000000e+00 : f32
    %221 = vector.broadcast %cst_89 : f32 to vector<2x32xf32>
    %222 = arith.addf %220, %221 : vector<2x32xf32>
    %cst_90 = arith.constant 5.000000e-01 : f32
    %223 = vector.broadcast %cst_90 : f32 to vector<2x32xf32>
    %224 = arith.mulf %223, %222 : vector<2x32xf32>
    %225 = vector.extract_strided_slice %203 {offsets = [0, 64], sizes = [2, 32], strides = [1, 1]} : vector<2x96xf32> to vector<2x32xf32>
    %226 = vector.extract_strided_slice %204 {offsets = [0, 64], sizes = [2, 32], strides = [1, 1]} : vector<2x96xf32> to vector<2x32xf32>
    %227 = arith.addf %226, %15 : vector<2x32xf32>
    %228 = arith.mulf %214, %227 : vector<2x32xf32>
    %229 = arith.addf %225, %228 : vector<2x32xf32>
    %230 = math.tanh %229 : vector<2x32xf32>
    %cst_91 = arith.constant 1.000000e+00 : f32
    %231 = vector.broadcast %cst_91 : f32 to vector<2x32xf32>
    %232 = arith.subf %231, %224 : vector<2x32xf32>
    %233 = arith.mulf %232, %230 : vector<2x32xf32>
    %234 = arith.mulf %224, %198 : vector<2x32xf32>
    %235 = arith.addf %233, %234 : vector<2x32xf32>
    %c0_92 = arith.constant 0 : index
    %c5_93 = arith.constant 5 : index
    %c0_94 = arith.constant 0 : index
    %236 = vector.load %arg7[%c0_92, %c5_93, %c0_94] : memref<2x8x32xf32, #tpu.memory_space<vmem>>, vector<2x1x32xf32>
    %237 = vector.shape_cast %236 : vector<2x1x32xf32> to vector<2x32xf32>
    %238 = vector.shape_cast %235 : vector<2x32xf32> to vector<2x1x32xf32>
    tpu.vector_store %arg7[%c0_92, %c5_93, %c0_94], %238 {strides = array<i32>} : memref<2x8x32xf32, #tpu.memory_space<vmem>>, vector<2x1x32xf32>,
    %c0_95 = arith.constant 0 : index
    %c6 = arith.constant 6 : index
    %c0_96 = arith.constant 0 : index
    %239 = vector.load %arg9[%c0_95, %c6, %c0_96] : memref<2x8x96xf32, #tpu.memory_space<vmem>>, vector<2x1x96xf32>
    %240 = vector.shape_cast %239 : vector<2x1x96xf32> to vector<2x96xf32>
    %cst_97 = arith.constant dense<0.000000e+00> : vector<2x96xf32>
    %241 = tpu.matmul %235, %12, %cst_97 {dimension_numbers = #tpu.dot_dimension_numbers<[1], [0], [0], [1], [0, 0, 1, 1], [], []>} : vector<2x32xf32>, vector<32x96xf32>, vector<2x96xf32> -> vector<2x96xf32>
    %242 = vector.extract_strided_slice %240 {offsets = [0, 0], sizes = [2, 32], strides = [1, 1]} : vector<2x96xf32> to vector<2x32xf32>
    %243 = vector.extract_strided_slice %241 {offsets = [0, 0], sizes = [2, 32], strides = [1, 1]} : vector<2x96xf32> to vector<2x32xf32>
    %244 = arith.addf %242, %243 : vector<2x32xf32>
    %cst_98 = arith.constant 5.000000e-01 : f32
    %245 = vector.broadcast %cst_98 : f32 to vector<2x32xf32>
    %246 = arith.mulf %245, %244 : vector<2x32xf32>
    %247 = math.tanh %246 : vector<2x32xf32>
    %cst_99 = arith.constant 1.000000e+00 : f32
    %248 = vector.broadcast %cst_99 : f32 to vector<2x32xf32>
    %249 = arith.addf %247, %248 : vector<2x32xf32>
    %cst_100 = arith.constant 5.000000e-01 : f32
    %250 = vector.broadcast %cst_100 : f32 to vector<2x32xf32>
    %251 = arith.mulf %250, %249 : vector<2x32xf32>
    %252 = vector.extract_strided_slice %240 {offsets = [0, 32], sizes = [2, 32], strides = [1, 1]} : vector<2x96xf32> to vector<2x32xf32>
    %253 = vector.extract_strided_slice %241 {offsets = [0, 32], sizes = [2, 32], strides = [1, 1]} : vector<2x96xf32> to vector<2x32xf32>
    %254 = arith.addf %252, %253 : vector<2x32xf32>
    %cst_101 = arith.constant 5.000000e-01 : f32
    %255 = vector.broadcast %cst_101 : f32 to vector<2x32xf32>
    %256 = arith.mulf %255, %254 : vector<2x32xf32>
    %257 = math.tanh %256 : vector<2x32xf32>
    %cst_102 = arith.constant 1.000000e+00 : f32
    %258 = vector.broadcast %cst_102 : f32 to vector<2x32xf32>
    %259 = arith.addf %257, %258 : vector<2x32xf32>
    %cst_103 = arith.constant 5.000000e-01 : f32
    %260 = vector.broadcast %cst_103 : f32 to vector<2x32xf32>
    %261 = arith.mulf %260, %259 : vector<2x32xf32>
    %262 = vector.extract_strided_slice %240 {offsets = [0, 64], sizes = [2, 32], strides = [1, 1]} : vector<2x96xf32> to vector<2x32xf32>
    %263 = vector.extract_strided_slice %241 {offsets = [0, 64], sizes = [2, 32], strides = [1, 1]} : vector<2x96xf32> to vector<2x32xf32>
    %264 = arith.addf %263, %15 : vector<2x32xf32>
    %265 = arith.mulf %251, %264 : vector<2x32xf32>
    %266 = arith.addf %262, %265 : vector<2x32xf32>
    %267 = math.tanh %266 : vector<2x32xf32>
    %cst_104 = arith.constant 1.000000e+00 : f32
    %268 = vector.broadcast %cst_104 : f32 to vector<2x32xf32>
    %269 = arith.subf %268, %261 : vector<2x32xf32>
    %270 = arith.mulf %269, %267 : vector<2x32xf32>
    %271 = arith.mulf %261, %235 : vector<2x32xf32>
    %272 = arith.addf %270, %271 : vector<2x32xf32>
    %c0_105 = arith.constant 0 : index
    %c6_106 = arith.constant 6 : index
    %c0_107 = arith.constant 0 : index
    %273 = vector.load %arg7[%c0_105, %c6_106, %c0_107] : memref<2x8x32xf32, #tpu.memory_space<vmem>>, vector<2x1x32xf32>
    %274 = vector.shape_cast %273 : vector<2x1x32xf32> to vector<2x32xf32>
    %275 = vector.shape_cast %272 : vector<2x32xf32> to vector<2x1x32xf32>
    tpu.vector_store %arg7[%c0_105, %c6_106, %c0_107], %275 {strides = array<i32>} : memref<2x8x32xf32, #tpu.memory_space<vmem>>, vector<2x1x32xf32>,
    %c0_108 = arith.constant 0 : index
    %c7 = arith.constant 7 : index
    %c0_109 = arith.constant 0 : index
    %276 = vector.load %arg9[%c0_108, %c7, %c0_109] : memref<2x8x96xf32, #tpu.memory_space<vmem>>, vector<2x1x96xf32>
    %277 = vector.shape_cast %276 : vector<2x1x96xf32> to vector<2x96xf32>
    %cst_110 = arith.constant dense<0.000000e+00> : vector<2x96xf32>
    %278 = tpu.matmul %272, %12, %cst_110 {dimension_numbers = #tpu.dot_dimension_numbers<[1], [0], [0], [1], [0, 0, 1, 1], [], []>} : vector<2x32xf32>, vector<32x96xf32>, vector<2x96xf32> -> vector<2x96xf32>
    %279 = vector.extract_strided_slice %277 {offsets = [0, 0], sizes = [2, 32], strides = [1, 1]} : vector<2x96xf32> to vector<2x32xf32>
    %280 = vector.extract_strided_slice %278 {offsets = [0, 0], sizes = [2, 32], strides = [1, 1]} : vector<2x96xf32> to vector<2x32xf32>
    %281 = arith.addf %279, %280 : vector<2x32xf32>
    %cst_111 = arith.constant 5.000000e-01 : f32
    %282 = vector.broadcast %cst_111 : f32 to vector<2x32xf32>
    %283 = arith.mulf %282, %281 : vector<2x32xf32>
    %284 = math.tanh %283 : vector<2x32xf32>
    %cst_112 = arith.constant 1.000000e+00 : f32
    %285 = vector.broadcast %cst_112 : f32 to vector<2x32xf32>
    %286 = arith.addf %284, %285 : vector<2x32xf32>
    %cst_113 = arith.constant 5.000000e-01 : f32
    %287 = vector.broadcast %cst_113 : f32 to vector<2x32xf32>
    %288 = arith.mulf %287, %286 : vector<2x32xf32>
    %289 = vector.extract_strided_slice %277 {offsets = [0, 32], sizes = [2, 32], strides = [1, 1]} : vector<2x96xf32> to vector<2x32xf32>
    %290 = vector.extract_strided_slice %278 {offsets = [0, 32], sizes = [2, 32], strides = [1, 1]} : vector<2x96xf32> to vector<2x32xf32>
    %291 = arith.addf %289, %290 : vector<2x32xf32>
    %cst_114 = arith.constant 5.000000e-01 : f32
    %292 = vector.broadcast %cst_114 : f32 to vector<2x32xf32>
    %293 = arith.mulf %292, %291 : vector<2x32xf32>
    %294 = math.tanh %293 : vector<2x32xf32>
    %cst_115 = arith.constant 1.000000e+00 : f32
    %295 = vector.broadcast %cst_115 : f32 to vector<2x32xf32>
    %296 = arith.addf %294, %295 : vector<2x32xf32>
    %cst_116 = arith.constant 5.000000e-01 : f32
    %297 = vector.broadcast %cst_116 : f32 to vector<2x32xf32>
    %298 = arith.mulf %297, %296 : vector<2x32xf32>
    %299 = vector.extract_strided_slice %277 {offsets = [0, 64], sizes = [2, 32], strides = [1, 1]} : vector<2x96xf32> to vector<2x32xf32>
    %300 = vector.extract_strided_slice %278 {offsets = [0, 64], sizes = [2, 32], strides = [1, 1]} : vector<2x96xf32> to vector<2x32xf32>
    %301 = arith.addf %300, %15 : vector<2x32xf32>
    %302 = arith.mulf %288, %301 : vector<2x32xf32>
    %303 = arith.addf %299, %302 : vector<2x32xf32>
    %304 = math.tanh %303 : vector<2x32xf32>
    %cst_117 = arith.constant 1.000000e+00 : f32
    %305 = vector.broadcast %cst_117 : f32 to vector<2x32xf32>
    %306 = arith.subf %305, %298 : vector<2x32xf32>
    %307 = arith.mulf %306, %304 : vector<2x32xf32>
    %308 = arith.mulf %298, %272 : vector<2x32xf32>
    %309 = arith.addf %307, %308 : vector<2x32xf32>
    %c0_118 = arith.constant 0 : index
    %c7_119 = arith.constant 7 : index
    %c0_120 = arith.constant 0 : index
    %310 = vector.load %arg7[%c0_118, %c7_119, %c0_120] : memref<2x8x32xf32, #tpu.memory_space<vmem>>, vector<2x1x32xf32>
    %311 = vector.shape_cast %310 : vector<2x1x32xf32> to vector<2x32xf32>
    %312 = vector.shape_cast %309 : vector<2x32xf32> to vector<2x1x32xf32>
    tpu.vector_store %arg7[%c0_118, %c7_119, %c0_120], %312 {strides = array<i32>} : memref<2x8x32xf32, #tpu.memory_space<vmem>>, vector<2x1x32xf32>,
    %c0_121 = arith.constant 0 : index
    %c0_122 = arith.constant 0 : index
    %313 = vector.load %arg10[%c0_121, %c0_122] : memref<2x32xf32, #tpu.memory_space<vmem>>, vector<2x32xf32>
    tpu.vector_store %arg10[%c0_121, %c0_122], %309 {strides = array<i32>} : memref<2x32xf32, #tpu.memory_space<vmem>>, vector<2x32xf32>,
    %c0_i32_123 = arith.constant 0 : i32
    %314 = arith.cmpi eq, %arg1, %c0_i32_123 : i32
    %315 = arith.extui %314 : i1 to i32
    %c0_i32_124 = arith.constant 0 : i32
    %316 = arith.cmpi ne, %315, %c0_i32_124 : i32
    scf.if %316 {
      %c0_125 = arith.constant 0 : index
      %c0_126 = arith.constant 0 : index
      %317 = vector.load %arg8[%c0_125, %c0_126] : memref<2x32xf32, #tpu.memory_space<vmem>>, vector<2x32xf32>
      tpu.vector_store %arg8[%c0_125, %c0_126], %309 {strides = array<i32>} : memref<2x32xf32, #tpu.memory_space<vmem>>, vector<2x32xf32>,
    } else {
    }
    return
  }
  func.func @transform_0(%arg0: i32, %arg1: i32) -> (i32, i32, i32) {
    %c0_i32 = arith.constant 0 : i32
    %c0_i32_0 = arith.constant 0 : i32
    return %arg0, %arg1, %c0_i32 : i32, i32, i32
  }
  func.func @transform_1(%arg0: i32, %arg1: i32) -> (i32, i32) {
    %c0_i32 = arith.constant 0 : i32
    %c0_i32_0 = arith.constant 0 : i32
    %c0_i32_1 = arith.constant 0 : i32
    return %c0_i32, %c0_i32_0 : i32, i32
  }
  func.func @transform_2(%arg0: i32, %arg1: i32) -> (i32, i32) {
    %c0_i32 = arith.constant 0 : i32
    %c0_i32_0 = arith.constant 0 : i32
    %c0_i32_1 = arith.constant 0 : i32
    return %c0_i32, %c0_i32_0 : i32, i32
  }
  func.func @transform_3(%arg0: i32, %arg1: i32) -> (i32, i32) {
    %c0_i32 = arith.constant 0 : i32
    %c0_i32_0 = arith.constant 0 : i32
    %c0_i32_1 = arith.constant 0 : i32
    return %c0_i32, %c0_i32_0 : i32, i32
  }
  func.func @transform_4(%arg0: i32, %arg1: i32) -> (i32, i32) {
    %c0_i32 = arith.constant 0 : i32
    %c0_i32_0 = arith.constant 0 : i32
    %c0_i32_1 = arith.constant 0 : i32
    return %c0_i32, %c0_i32_0 : i32, i32
  }
  func.func @transform_5(%arg0: i32, %arg1: i32) -> (i32, i32, i32) {
    %c0_i32 = arith.constant 0 : i32
    %c0_i32_0 = arith.constant 0 : i32
    return %arg0, %arg1, %c0_i32 : i32, i32, i32
  }
  func.func @transform_6(%arg0: i32, %arg1: i32) -> (i32, i32) {
    %c0_i32 = arith.constant 0 : i32
    %c0_i32_0 = arith.constant 0 : i32
    return %arg0, %c0_i32 : i32, i32
  }
}

</mosaic_0001>

<llo_original>
// kernel: tpu_custom_call.1
$region0: #{tpu_custom_call.1}
  #allocation0 [shape = 'u32[]', space=smem, size = 0x4, offset = 0x4, fixed_abs, tag = 'smem constant byte address 0x4 - core index']
  #allocation1 [shape = 'u32[144,128]{1,0:T(1,128)}', space=vmem, size = 0x12000, scoped, tag = 'internal scratch']
  #allocation2 [shape = 'f32[2,8,96]{2,1,0:T(8,128)}', space=vmem, size = 0x2000, scoped, tag = 'scratch operand']
  #allocation3 [shape = 'f32[2,32]{1,0:T(2,128)}', space=vmem, size = 0x400, scoped, tag = 'scratch operand']
  %s0 = inlined_call_operand.hbm [shape: f32[2,8,16], index: 0, kind: input, shape index: {}]
  %s1 = inlined_call_operand.hbm [shape: f32[16,96], index: 1, kind: input, shape index: {}]
  %s2 = inlined_call_operand.hbm [shape: f32[32,96], index: 2, kind: input, shape index: {}]
  %s3 = inlined_call_operand.vmem [shape: f32[1,96], index: 3, kind: input, shape index: {}]
  %s4 = inlined_call_operand.vmem [shape: f32[1,32], index: 4, kind: input, shape index: {}]
  %s5 = inlined_call_operand.hbm [shape: f32[2,8,32], index: 5, kind: output, shape index: {0}]
  %s6 = inlined_call_operand.hbm [shape: f32[2,32], index: 6, kind: output, shape index: {1}]
  %7 = xla_tuple %s5, %s6
  %s8 = sld [smem:[#allocation0]]
  $region58: #{tpu_custom_call.1} parent=0
    _
  %s10 = ssub.s32 1, %s8
  %s11 = scalar_select 0, %s10, %s8
  $region1: #{tpu_custom_call.1} parent=0
    #allocation4 [shape = 'u8[8192]{0}', space=vmem, size = 0x2000, scoped, tag = 'input window, operand 0, single buffered']
    #allocation5 [shape = 's32[1]{0}', space=sflag, size = 0x4, scoped, tag = 'scoped memory for tpu_custom_call.1']
    #allocation6 [shape = 's32[1]{0}', space=sflag, size = 0x4, scoped, tag = 'scoped memory for tpu_custom_call.1']
    #allocation7 [shape = 'u8[8192]{0}', space=vmem, size = 0x2000, scoped, tag = 'input window, operand 1, single buffered']
    #allocation8 [shape = 's32[1]{0}', space=sflag, size = 0x4, scoped, tag = 'scoped memory for tpu_custom_call.1']
    #allocation9 [shape = 'u8[16384]{0}', space=vmem, size = 0x4000, scoped, tag = 'input window, operand 2, single buffered']
    #allocation10 [shape = 'u8[8192]{0}', space=vmem, size = 0x2000, scoped, tag = 'output window, operand 0, single buffered']
    #allocation11 [shape = 'u8[1024]{0}', space=vmem, size = 0x400, scoped, tag = 'output window, operand 1, single buffered']
    #allocation12 [shape = 's32[1]{0}', space=sflag, size = 0x4, scoped, tag = 'scoped memory for tpu_custom_call.1']
    %12 = vsyncpa [#allocation5], 0
    %13 = vsyncpa [#allocation8], 0
    %14 = vsyncpa [#allocation6], 0
    %15 = vsyncpa [#allocation12], 0
    // Predicated region
    $region2: #{tpu_custom_call.1} parent=1 // pred_check
      _
    $region3: #{tpu_custom_call.1} parent=1 // pred_check_branch
      %17 = sbr.rel (0) target = $region5
    $region4: #{tpu_custom_call.1} parent=1 // pred_region
      %s19 = ssub.s32 256, 256
      %20 = vsyncadd [#allocation5], %s19
      %s21 = sshll.u32 [#allocation4], 4
      %s22 = int_to_ptr.vmem [resolvable:$true] %s21
      %27 = dma.hbm_to_vmem [thread:$0]  %s0, 256, %s22, [#allocation5], 128, 128, 8
    $region5: #{tpu_custom_call.1} parent=1 // pred_fallthru
      _
    // Predicated region
    $region6: #{tpu_custom_call.1} parent=1 // pred_check
      _
    $region7: #{tpu_custom_call.1} parent=1 // pred_check_branch
      %29 = sbr.rel (0) target = $region9
    $region8: #{tpu_custom_call.1} parent=1 // pred_region
      %s31 = ssub.s32 256, 256
      %32 = vsyncadd [#allocation8], %s31
      %s33 = sshll.u32 [#allocation7], 4
      %s34 = int_to_ptr.vmem [resolvable:$true] %s33
      %39 = dma.hbm_to_vmem [thread:$0]  %s1, 256, %s34, [#allocation8], 128, 128, 8
    $region9: #{tpu_custom_call.1} parent=1 // pred_fallthru
      _
    // Predicated region
    $region10: #{tpu_custom_call.1} parent=1 // pred_check
      _
    $region11: #{tpu_custom_call.1} parent=1 // pred_check_branch
      %41 = sbr.rel (0) target = $region13
    $region12: #{tpu_custom_call.1} parent=1 // pred_region
      %s43 = ssub.s32 512, 512
      %44 = vsyncadd [#allocation8], %s43
      %s45 = sshll.u32 [#allocation9], 4
      %s46 = int_to_ptr.vmem [resolvable:$true] %s45
      %51 = dma.hbm_to_vmem [thread:$0]  %s2, 512, %s46, [#allocation8], 128, 128, 8
    $region13: #{tpu_custom_call.1} parent=1 // pred_fallthru
      _
    // Predicated region
    $region14: #{tpu_custom_call.1} parent=1 // pred_check
      _
    $region15: #{tpu_custom_call.1} parent=1 // pred_check_branch
      %53 = sbr.rel (0) target = $region17
    $region16: #{tpu_custom_call.1} parent=1 // pred_region
      _
    $region17: #{tpu_custom_call.1} parent=1 // pred_fallthru
      _
    // Predicated region
    $region18: #{tpu_custom_call.1} parent=1 // pred_check
      _
    $region19: #{tpu_custom_call.1} parent=1 // pred_check_branch
      %55 = sbr.rel (0) target = $region21
    $region20: #{tpu_custom_call.1} parent=1 // pred_region
      _
    $region21: #{tpu_custom_call.1} parent=1 // pred_fallthru
      _
    // Predicated region
    $region22: #{tpu_custom_call.1} parent=1 // pred_check
      _
    $region23: #{tpu_custom_call.1} parent=1 // pred_check_branch
      %57 = sbr.rel (0) target = $region25
    $region24: #{tpu_custom_call.1} parent=1 // pred_region
      %58 = dma.done [#allocation5], 256
    $region25: #{tpu_custom_call.1} parent=1 // pred_fallthru
      _
    // Predicated region
    $region26: #{tpu_custom_call.1} parent=1 // pred_check
      _
    $region27: #{tpu_custom_call.1} parent=1 // pred_check_branch
      %60 = sbr.rel (0) target = $region29
    $region28: #{tpu_custom_call.1} parent=1 // pred_region
      %61 = dma.done [#allocation8], 256
    $region29: #{tpu_custom_call.1} parent=1 // pred_fallthru
      _
    // Predicated region
    $region30: #{tpu_custom_call.1} parent=1 // pred_check
      _
    $region31: #{tpu_custom_call.1} parent=1 // pred_check_branch
      %63 = sbr.rel (0) target = $region33
    $region32: #{tpu_custom_call.1} parent=1 // pred_region
      %64 = dma.done [#allocation8], 512
    $region33: #{tpu_custom_call.1} parent=1 // pred_fallthru
      _
    %p65 = scmp.eq.s32.totalorder 0, 0
    // Predicated region
    $region34: #{tpu_custom_call.1} parent=1 // pred_check
      %p66 = pneg %p65
    $region35: #{tpu_custom_call.1} parent=1 // pred_check_branch
      %68 = sbr.rel (%p66) target = $region37
    $region36: #{tpu_custom_call.1} parent=1 // pred_region
      %vm69 = vcmask 254976
      %70 = vst.msk [vmem:[#allocation3] sm:$0x3] %vm69, 0.0
    $region37: #{tpu_custom_call.1} parent=1 // pred_fallthru
      _
    %v71 = vld [vmem:[#allocation4] sm:$0xff]
    %v72 = vld [vmem:[#allocation4 + $0x8] sm:$0xff]
    %v73 = vld [vmem:[#allocation7] sm:$0xff]
    %v74 = vld [vmem:[#allocation7 + $0x8] sm:$0xff]
    %v75 = vld [vmem:[%s3] sm:$0x1]
    %v77 = vlaneseq
    %v78 = vshrl.u32 %v77, 7
    %v79 = vsub.s32 0, %v78
    %v80 = vrot.slane %v75, %v79
    %vm82 = vcmask 130048
    %v84 = vsel %vm82, %v71, 0
    %v87 = vsel %vm82, %v72, 0
    %89 = vmatprep.subr.mxu0 0.0
    %90 = vmatpush1.msra.mxu0 %v73
    %91 = vmatprep.subr.mxu0 0.0
    %92 = vmatpush1.msra.mxu0 %v74
    %93 = vmatprep.subr.mxu0 0.0
    %94 = vmatpush1.msra.mxu0 0.0
    %95 = vmatprep.subr.mxu0 0.0
    %96 = vmatpush1.msra.mxu0 0.0
    %97 = vmatprep.subr.mxu0 0.0
    %98 = vmatpush1.msra.mxu0 0.0
    %99 = vmatprep.subr.mxu0 0.0
    %100 = vmatpush1.msra.mxu0 0.0
    %101 = vmatprep.subr.mxu0 0.0
    %102 = vmatpush1.msra.mxu0 0.0
    %103 = vmatprep.subr.mxu0 0.0
    %104 = vmatpush1.msra.mxu0 0.0
    %105 = vmatprep.subr.mxu0 0.0
    %106 = vmatpush1.msra.mxu0 0.0
    %107 = vmatprep.subr.mxu0 0.0
    %108 = vmatpush1.msra.mxu0 0.0
    %109 = vmatprep.subr.mxu0 0.0
    %110 = vmatpush1.msra.mxu0 0.0
    %111 = vmatprep.subr.mxu0 0.0
    %112 = vmatpush1.msra.mxu0 0.0
    %113 = vmatprep.subr.mxu0 0.0
    %114 = vmatpush1.msra.mxu0 0.0
    %115 = vmatprep.subr.mxu0 0.0
    %116 = vmatpush1.msra.mxu0 0.0
    %117 = vmatprep.subr.mxu0 0.0
    %118 = vmatpush1.msra.mxu0 0.0
    %119 = vmatprep.subr.mxu0 0.0
    %120 = vmatpush1.msra.mxu0 0.0
    %121 = vmatprep.subr.mxu0 0.0
    %122 = vmatpush1.msra.mxu0 0.0
    %123 = vmatprep.subr.mxu0 0.0
    %124 = vmatpush1.msra.mxu0 0.0
    %125 = vmatprep.subr.mxu0 0.0
    %126 = vmatpush1.msra.mxu0 0.0
    %127 = vmatprep.subr.mxu0 0.0
    %128 = vmatpush1.msra.mxu0 0.0
    %129 = vmatprep.subr.mxu0 0.0
    %130 = vmatpush1.msra.mxu0 0.0
    %131 = vmatprep.subr.mxu0 0.0
    %132 = vmatpush1.msra.mxu0 0.0
    %133 = vmatprep.subr.mxu0 0.0
    %134 = vmatpush1.msra.mxu0 0.0
    %135 = vmatprep.subr.mxu0 0.0
    %136 = vmatpush1.msra.mxu0 0.0
    %137 = vmatprep.subr.mxu0 0.0
    %138 = vmatpush1.msra.mxu0 0.0
    %139 = vmatprep.subr.mxu0 0.0
    %140 = vmatpush1.msra.mxu0 0.0
    %141 = vmatprep.subr.mxu0 0.0
    %142 = vmatpush1.msra.mxu0 0.0
    %143 = vmatprep.subr.mxu0 0.0
    %144 = vmatpush1.msra.mxu0 0.0
    %145 = vmatprep.subr.mxu0 0.0
    %146 = vmatpush1.msra.mxu0 0.0
    %147 = vmatprep.subr.mxu0 0.0
    %148 = vmatpush1.msra.mxu0 0.0
    %149 = vmatprep.subr.mxu0 0.0
    %150 = vmatpush1.msra.mxu0 0.0
    %151 = vmatprep.subr.mxu0 0.0
    %152 = vmatpush1.msra.mxu0 0.0
    %153 = vmatprep.mubr.f32.mxu0 0.0
    %154 = vmatmul.mubr.f32.gmra.mrb[0].mxu0 %v84
    %v155 = vpop.f32.mrb[0].mxu0
    %v156 = vadd.f32 %v80, %v155
    %v157 = vpop.f32.mrb[0].mxu0
    %158 = vmatprep.mubr.f32.mxu0 0.0
    %159 = vmatmul.mubr.f32.gmra.mrb[0].mxu0 %v87
    %v160 = vpop.f32.mrb[0].mxu0
    %v161 = vadd.f32 %v80, %v160
    %v162 = vpop.f32.mrb[0].mxu0
    %163 = vdwg.mxu0
    %vm164 = vcmask 785408
    %165 = vst.msk [vmem:[#allocation2] sm:$0xff] %vm164, %v156
    %166 = vst.msk [vmem:[#allocation2 + $0x8] sm:$0xff] %vm164, %v161
    %v167 = vld [vmem:[#allocation9] sm:$0xff]
    %v168 = vld [vmem:[#allocation9 + $0x8] sm:$0xff]
    %v169 = vld [vmem:[#allocation9 + $0x10] sm:$0xff]
    %v170 = vld [vmem:[#allocation9 + $0x18] sm:$0xff]
    %v171 = vld [vmem:[%s4] sm:$0x1]
    %v173 = vlaneseq
    %v174 = vshrl.u32 %v173, 7
    %v175 = vsub.s32 0, %v174
    %v176 = vrot.slane %v171, %v175
    %v177 = vld [vmem:[#allocation3] sm:$0x3]
    %v178 = vld [vmem:[#allocation2] sm:$0x1]
    %v179 = vld [vmem:[#allocation2 + $0x8] sm:$0x1]
    %vm180 = vcmask 261120
    %v182 = vsel %vm180, %v177, 0
    %184 = vmatprep.subr.mxu0 0.0
    %185 = vmatpush1.msra.mxu0 %v167
    %186 = vmatprep.subr.mxu0 0.0
    %187 = vmatpush1.msra.mxu0 %v168
    %188 = vmatprep.subr.mxu0 0.0
    %189 = vmatpush1.msra.mxu0 %v169
    %190 = vmatprep.subr.mxu0 0.0
    %191 = vmatpush1.msra.mxu0 %v170
    %192 = vmatprep.subr.mxu0 0.0
    %193 = vmatpush1.msra.mxu0 0.0
    %194 = vmatprep.subr.mxu0 0.0
    %195 = vmatpush1.msra.mxu0 0.0
    %196 = vmatprep.subr.mxu0 0.0
    %197 = vmatpush1.msra.mxu0 0.0
    %198 = vmatprep.subr.mxu0 0.0
    %199 = vmatpush1.msra.mxu0 0.0
    %200 = vmatprep.subr.mxu0 0.0
    %201 = vmatpush1.msra.mxu0 0.0
    %202 = vmatprep.subr.mxu0 0.0
    %203 = vmatpush1.msra.mxu0 0.0
    %204 = vmatprep.subr.mxu0 0.0
    %205 = vmatpush1.msra.mxu0 0.0
    %206 = vmatprep.subr.mxu0 0.0
    %207 = vmatpush1.msra.mxu0 0.0
    %208 = vmatprep.subr.mxu0 0.0
    %209 = vmatpush1.msra.mxu0 0.0
    %210 = vmatprep.subr.mxu0 0.0
    %211 = vmatpush1.msra.mxu0 0.0
    %212 = vmatprep.subr.mxu0 0.0
    %213 = vmatpush1.msra.mxu0 0.0
    %214 = vmatprep.subr.mxu0 0.0
    %215 = vmatpush1.msra.mxu0 0.0
    %216 = vmatprep.subr.mxu0 0.0
    %217 = vmatpush1.msra.mxu0 0.0
    %218 = vmatprep.subr.mxu0 0.0
    %219 = vmatpush1.msra.mxu0 0.0
    %220 = vmatprep.subr.mxu0 0.0
    %221 = vmatpush1.msra.mxu0 0.0
    %222 = vmatprep.subr.mxu0 0.0
    %223 = vmatpush1.msra.mxu0 0.0
    %224 = vmatprep.subr.mxu0 0.0
    %225 = vmatpush1.msra.mxu0 0.0
    %226 = vmatprep.subr.mxu0 0.0
    %227 = vmatpush1.msra.mxu0 0.0
    %228 = vmatprep.subr.mxu0 0.0
    %229 = vmatpush1.msra.mxu0 0.0
    %230 = vmatprep.subr.mxu0 0.0
    %231 = vmatpush1.msra.mxu0 0.0
    %232 = vmatprep.subr.mxu0 0.0
    %233 = vmatpush1.msra.mxu0 0.0
    %234 = vmatprep.subr.mxu0 0.0
    %235 = vmatpush1.msra.mxu0 0.0
    %236 = vmatprep.subr.mxu0 0.0
    %237 = vmatpush1.msra.mxu0 0.0
    %238 = vmatprep.subr.mxu0 0.0
    %239 = vmatpush1.msra.mxu0 0.0
    %240 = vmatprep.subr.mxu0 0.0
    %241 = vmatpush1.msra.mxu0 0.0
    %242 = vmatprep.subr.mxu0 0.0
    %243 = vmatpush1.msra.mxu0 0.0
    %244 = vmatprep.subr.mxu0 0.0
    %245 = vmatpush1.msra.mxu0 0.0
    %246 = vmatprep.subr.mxu0 0.0
    %247 = vmatpush1.msra.mxu0 0.0
    %248 = vmatprep.mubr.f32.mxu0 0.0
    %249 = vmatmul.mubr.f32.gmra.mrb[0].mxu0 %v182
    %v250 = vpop.f32.mrb[0].mxu0
    %v251 = vadd.f32 0.0, %v250
    %v252 = vpop.f32.mrb[0].mxu0
    %253 = vdwg.mxu0
    %v255 = vrot.slane %v251, 1
    %v258 = vadd.f32 %v178, %v251
    %v259 = vadd.f32 %v179, %v255
    %v260 = vmul.f32 %v258, 0.5
    %v261 = vmul.f32 %v259, 0.5
    %v262 = vtanh.pop %v260
    %v263 = vtanh.pop %v261
    %v264 = vadd.f32 %v262, 1.0
    %v265 = vadd.f32 %v263, 1.0
    %v266 = vmul.f32 %v264, 0.5
    %v267 = vmul.f32 %v265, 0.5
    %268 = vrot.lane.b32.xlu0 %v176, 64
    %v269 = vpop.permute.xlu0 %268
    %v271 = vadd.f32 %v251, %v269
    %v273 = vrot.slane %v271, 1
    %274 = vrot.lane.b32.xlu0 %v271, 64
    %v275 = vpop.permute.xlu0 %274
    %276 = vrot.lane.b32.xlu0 %v273, 64
    %v277 = vpop.permute.xlu0 %276
    %v280 = vmul.f32 %v266, %v275
    %v281 = vmul.f32 %v267, %v277
    %284 = vrot.lane.b32.xlu0 %v280, 64
    %v285 = vpop.permute.xlu0 %284
    %286 = vrot.lane.b32.xlu0 %v281, 64
    %v287 = vpop.permute.xlu0 %286
    %v290 = vadd.f32 %v178, %v285
    %v291 = vadd.f32 %v179, %v287
    %v292 = vtanh.pop %v290
    %v293 = vtanh.pop %v291
    %v294 = vsub.f32 1.0, %v266
    %v295 = vsub.f32 1.0, %v267
    %298 = vrot.lane.b32.xlu0 %v292, 96
    %v299 = vpop.permute.xlu0 %298
    %300 = vrot.lane.b32.xlu0 %v293, 96
    %v301 = vpop.permute.xlu0 %300
    %v304 = vmul.f32 %v294, %v299
    %v305 = vmul.f32 %v295, %v301
    %v306 = vrot.slane %v177, 1
    %307 = vrot.lane.b32.xlu0 %v177, 32
    %v308 = vpop.permute.xlu0 %307
    %309 = vrot.lane.b32.xlu0 %v306, 32
    %v310 = vpop.permute.xlu0 %309
    %v313 = vmul.f32 %v266, %v308
    %v314 = vmul.f32 %v267, %v310
    %v315 = vadd.f32 %v304, %v313
    %v316 = vadd.f32 %v305, %v314
    %319 = vrot.lane.b32.xlu0 %v315, 96
    %v320 = vpop.permute.xlu0 %319
    %321 = vrot.lane.b32.xlu0 %v316, 96
    %v322 = vpop.permute.xlu0 %321
    %vm325 = vcmask 253952
    %326 = vst.msk [vmem:[#allocation10] sm:$0x1] %vm325, %v320
    %327 = vst.msk [vmem:[#allocation10 + $0x8] sm:$0x1] %vm325, %v322
    %v328 = vld [vmem:[#allocation2 + $0x1] sm:$0x1]
    %v329 = vld [vmem:[#allocation2 + $0x9] sm:$0x1]
    %v330 = vrot.slane %v316, 7
    %vm331 = vcmask 1041409
    %v332 = vsel %vm331, %v330, %v315
    %333 = vrot.lane.b32.xlu0 %v332, 96
    %v334 = vpop.permute.xlu0 %333
    %v335 = vsel %vm180, %v334, 0
    %337 = vmatprep.subr.mxu0 0.0
    %338 = vmatpush1.msra.mxu0 %v167
    %339 = vmatprep.subr.mxu0 0.0
    %340 = vmatpush1.msra.mxu0 %v168
    %341 = vmatprep.subr.mxu0 0.0
    %342 = vmatpush1.msra.mxu0 %v169
    %343 = vmatprep.subr.mxu0 0.0
    %344 = vmatpush1.msra.mxu0 %v170
    %345 = vmatprep.subr.mxu0 0.0
    %346 = vmatpush1.msra.mxu0 0.0
    %347 = vmatprep.subr.mxu0 0.0
    %348 = vmatpush1.msra.mxu0 0.0
    %349 = vmatprep.subr.mxu0 0.0
    %350 = vmatpush1.msra.mxu0 0.0
    %351 = vmatprep.subr.mxu0 0.0
    %352 = vmatpush1.msra.mxu0 0.0
    %353 = vmatprep.subr.mxu0 0.0
    %354 = vmatpush1.msra.mxu0 0.0
    %355 = vmatprep.subr.mxu0 0.0
    %356 = vmatpush1.msra.mxu0 0.0
    %357 = vmatprep.subr.mxu0 0.0
    %358 = vmatpush1.msra.mxu0 0.0
    %359 = vmatprep.subr.mxu0 0.0
    %360 = vmatpush1.msra.mxu0 0.0
    %361 = vmatprep.subr.mxu0 0.0
    %362 = vmatpush1.msra.mxu0 0.0
    %363 = vmatprep.subr.mxu0 0.0
    %364 = vmatpush1.msra.mxu0 0.0
    %365 = vmatprep.subr.mxu0 0.0
    %366 = vmatpush1.msra.mxu0 0.0
    %367 = vmatprep.subr.mxu0 0.0
    %368 = vmatpush1.msra.mxu0 0.0
    %369 = vmatprep.subr.mxu0 0.0
    %370 = vmatpush1.msra.mxu0 0.0
    %371 = vmatprep.subr.mxu0 0.0
    %372 = vmatpush1.msra.mxu0 0.0
    %373 = vmatprep.subr.mxu0 0.0
    %374 = vmatpush1.msra.mxu0 0.0
    %375 = vmatprep.subr.mxu0 0.0
    %376 = vmatpush1.msra.mxu0 0.0
    %377 = vmatprep.subr.mxu0 0.0
    %378 = vmatpush1.msra.mxu0 0.0
    %379 = vmatprep.subr.mxu0 0.0
    %380 = vmatpush1.msra.mxu0 0.0
    %381 = vmatprep.subr.mxu0 0.0
    %382 = vmatpush1.msra.mxu0 0.0
    %383 = vmatprep.subr.mxu0 0.0
    %384 = vmatpush1.msra.mxu0 0.0
    %385 = vmatprep.subr.mxu0 0.0
    %386 = vmatpush1.msra.mxu0 0.0
    %387 = vmatprep.subr.mxu0 0.0
    %388 = vmatpush1.msra.mxu0 0.0
    %389 = vmatprep.subr.mxu0 0.0
    %390 = vmatpush1.msra.mxu0 0.0
    %391 = vmatprep.subr.mxu0 0.0
    %392 = vmatpush1.msra.mxu0 0.0
    %393 = vmatprep.subr.mxu0 0.0
    %394 = vmatpush1.msra.mxu0 0.0
    %395 = vmatprep.subr.mxu0 0.0
    %396 = vmatpush1.msra.mxu0 0.0
    %397 = vmatprep.subr.mxu0 0.0
    %398 = vmatpush1.msra.mxu0 0.0
    %399 = vmatprep.subr.mxu0 0.0
    %400 = vmatpush1.msra.mxu0 0.0
    %401 = vmatprep.mubr.f32.mxu0 0.0
    %402 = vmatmul.mubr.f32.gmra.mrb[0].mxu0 %v335
    %v403 = vpop.f32.mrb[0].mxu0
    %v404 = vadd.f32 0.0, %v403
    %v405 = vpop.f32.mrb[0].mxu0
    %406 = vdwg.mxu0
    %v408 = vrot.slane %v404, 1
    %v411 = vadd.f32 %v328, %v404
    %v412 = vadd.f32 %v329, %v408
    %v413 = vmul.f32 %v411, 0.5
    %v414 = vmul.f32 %v412, 0.5
    %v415 = vtanh.pop %v413
    %v416 = vtanh.pop %v414
    %v417 = vadd.f32 %v415, 1.0
    %v418 = vadd.f32 %v416, 1.0
    %v419 = vmul.f32 %v417, 0.5
    %v420 = vmul.f32 %v418, 0.5
    %v421 = vadd.f32 %v404, %v269
    %v423 = vrot.slane %v421, 1
    %424 = vrot.lane.b32.xlu0 %v421, 64
    %v425 = vpop.permute.xlu0 %424
    %426 = vrot.lane.b32.xlu0 %v423, 64
    %v427 = vpop.permute.xlu0 %426
    %v430 = vmul.f32 %v419, %v425
    %v431 = vmul.f32 %v420, %v427
    %434 = vrot.lane.b32.xlu0 %v430, 64
    %v435 = vpop.permute.xlu0 %434
    %436 = vrot.lane.b32.xlu0 %v431, 64
    %v437 = vpop.permute.xlu0 %436
    %v440 = vadd.f32 %v328, %v435
    %v441 = vadd.f32 %v329, %v437
    %v442 = vtanh.pop %v440
    %v443 = vtanh.pop %v441
    %v444 = vsub.f32 1.0, %v419
    %v445 = vsub.f32 1.0, %v420
    %448 = vrot.lane.b32.xlu0 %v442, 96
    %v449 = vpop.permute.xlu0 %448
    %450 = vrot.lane.b32.xlu0 %v443, 96
    %v451 = vpop.permute.xlu0 %450
    %v454 = vmul.f32 %v444, %v449
    %v455 = vmul.f32 %v445, %v451
    %v456 = vmul.f32 %v419, %v315
    %v457 = vmul.f32 %v420, %v316
    %v458 = vadd.f32 %v454, %v456
    %v459 = vadd.f32 %v455, %v457
    %462 = vrot.lane.b32.xlu0 %v458, 96
    %v463 = vpop.permute.xlu0 %462
    %464 = vrot.lane.b32.xlu0 %v459, 96
    %v465 = vpop.permute.xlu0 %464
    %468 = vst.msk [vmem:[#allocation10 + $0x1] sm:$0x1] %vm325, %v463
    %469 = vst.msk [vmem:[#allocation10 + $0x9] sm:$0x1] %vm325, %v465
    %v470 = vld [vmem:[#allocation2 + $0x2] sm:$0x1]
    %v471 = vld [vmem:[#allocation2 + $0xa] sm:$0x1]
    %v472 = vrot.slane %v459, 7
    %v473 = vsel %vm331, %v472, %v458
    %474 = vrot.lane.b32.xlu0 %v473, 96
    %v475 = vpop.permute.xlu0 %474
    %v476 = vsel %vm180, %v475, 0
    %478 = vmatprep.subr.mxu0 0.0
    %479 = vmatpush1.msra.mxu0 %v167
    %480 = vmatprep.subr.mxu0 0.0
    %481 = vmatpush1.msra.mxu0 %v168
    %482 = vmatprep.subr.mxu0 0.0
    %483 = vmatpush1.msra.mxu0 %v169
    %484 = vmatprep.subr.mxu0 0.0
    %485 = vmatpush1.msra.mxu0 %v170
    %486 = vmatprep.subr.mxu0 0.0
    %487 = vmatpush1.msra.mxu0 0.0
    %488 = vmatprep.subr.mxu0 0.0
    %489 = vmatpush1.msra.mxu0 0.0
    %490 = vmatprep.subr.mxu0 0.0
    %491 = vmatpush1.msra.mxu0 0.0
    %492 = vmatprep.subr.mxu0 0.0
    %493 = vmatpush1.msra.mxu0 0.0
    %494 = vmatprep.subr.mxu0 0.0
    %495 = vmatpush1.msra.mxu0 0.0
    %496 = vmatprep.subr.mxu0 0.0
    %497 = vmatpush1.msra.mxu0 0.0
    %498 = vmatprep.subr.mxu0 0.0
    %499 = vmatpush1.msra.mxu0 0.0
    %500 = vmatprep.subr.mxu0 0.0
    %501 = vmatpush1.msra.mxu0 0.0
    %502 = vmatprep.subr.mxu0 0.0
    %503 = vmatpush1.msra.mxu0 0.0
    %504 = vmatprep.subr.mxu0 0.0
    %505 = vmatpush1.msra.mxu0 0.0
    %506 = vmatprep.subr.mxu0 0.0
    %507 = vmatpush1.msra.mxu0 0.0
    %508 = vmatprep.subr.mxu0 0.0
    %509 = vmatpush1.msra.mxu0 0.0
    %510 = vmatprep.subr.mxu0 0.0
    %511 = vmatpush1.msra.mxu0 0.0
    %512 = vmatprep.subr.mxu0 0.0
    %513 = vmatpush1.msra.mxu0 0.0
    %514 = vmatprep.subr.mxu0 0.0
    %515 = vmatpush1.msra.mxu0 0.0
    %516 = vmatprep.subr.mxu0 0.0
    %517 = vmatpush1.msra.mxu0 0.0
    %518 = vmatprep.subr.mxu0 0.0
    %519 = vmatpush1.msra.mxu0 0.0
    %520 = vmatprep.subr.mxu0 0.0
    %521 = vmatpush1.msra.mxu0 0.0
    %522 = vmatprep.subr.mxu0 0.0
    %523 = vmatpush1.msra.mxu0 0.0
    %524 = vmatprep.subr.mxu0 0.0
    %525 = vmatpush1.msra.mxu0 0.0
    %526 = vmatprep.subr.mxu0 0.0
    %527 = vmatpush1.msra.mxu0 0.0
    %528 = vmatprep.subr.mxu0 0.0
    %529 = vmatpush1.msra.mxu0 0.0
    %530 = vmatprep.subr.mxu0 0.0
    %531 = vmatpush1.msra.mxu0 0.0
    %532 = vmatprep.subr.mxu0 0.0
    %533 = vmatpush1.msra.mxu0 0.0
    %534 = vmatprep.subr.mxu0 0.0
    %535 = vmatpush1.msra.mxu0 0.0
    %536 = vmatprep.subr.mxu0 0.0
    %537 = vmatpush1.msra.mxu0 0.0
    %538 = vmatprep.subr.mxu0 0.0
    %539 = vmatpush1.msra.mxu0 0.0
    %540 = vmatprep.subr.mxu0 0.0
    %541 = vmatpush1.msra.mxu0 0.0
    %542 = vmatprep.mubr.f32.mxu0 0.0
    %543 = vmatmul.mubr.f32.gmra.mrb[0].mxu0 %v476
    %v544 = vpop.f32.mrb[0].mxu0
    %v545 = vadd.f32 0.0, %v544
    %v546 = vpop.f32.mrb[0].mxu0
    %547 = vdwg.mxu0
    %v549 = vrot.slane %v545, 1
    %v552 = vadd.f32 %v470, %v545
    %v553 = vadd.f32 %v471, %v549
    %v554 = vmul.f32 %v552, 0.5
    %v555 = vmul.f32 %v553, 0.5
    %v556 = vtanh.pop %v554
    %v557 = vtanh.pop %v555
    %v558 = vadd.f32 %v556, 1.0
    %v559 = vadd.f32 %v557, 1.0
    %v560 = vmul.f32 %v558, 0.5
    %v561 = vmul.f32 %v559, 0.5
    %v562 = vadd.f32 %v545, %v269
    %v564 = vrot.slane %v562, 1
    %565 = vrot.lane.b32.xlu0 %v562, 64
    %v566 = vpop.permute.xlu0 %565
    %567 = vrot.lane.b32.xlu0 %v564, 64
    %v568 = vpop.permute.xlu0 %567
    %v571 = vmul.f32 %v560, %v566
    %v572 = vmul.f32 %v561, %v568
    %575 = vrot.lane.b32.xlu0 %v571, 64
    %v576 = vpop.permute.xlu0 %575
    %577 = vrot.lane.b32.xlu0 %v572, 64
    %v578 = vpop.permute.xlu0 %577
    %v581 = vadd.f32 %v470, %v576
    %v582 = vadd.f32 %v471, %v578
    %v583 = vtanh.pop %v581
    %v584 = vtanh.pop %v582
    %v585 = vsub.f32 1.0, %v560
    %v586 = vsub.f32 1.0, %v561
    %589 = vrot.lane.b32.xlu0 %v583, 96
    %v590 = vpop.permute.xlu0 %589
    %591 = vrot.lane.b32.xlu0 %v584, 96
    %v592 = vpop.permute.xlu0 %591
    %v595 = vmul.f32 %v585, %v590
    %v596 = vmul.f32 %v586, %v592
    %v597 = vmul.f32 %v560, %v458
    %v598 = vmul.f32 %v561, %v459
    %v599 = vadd.f32 %v595, %v597
    %v600 = vadd.f32 %v596, %v598
    %603 = vrot.lane.b32.xlu0 %v599, 96
    %v604 = vpop.permute.xlu0 %603
    %605 = vrot.lane.b32.xlu0 %v600, 96
    %v606 = vpop.permute.xlu0 %605
    %609 = vst.msk [vmem:[#allocation10 + $0x2] sm:$0x1] %vm325, %v604
    %610 = vst.msk [vmem:[#allocation10 + $0xa] sm:$0x1] %vm325, %v606
    %v611 = vld [vmem:[#allocation2 + $0x3] sm:$0x1]
    %v612 = vld [vmem:[#allocation2 + $0xb] sm:$0x1]
    %v613 = vrot.slane %v600, 7
    %v614 = vsel %vm331, %v613, %v599
    %615 = vrot.lane.b32.xlu0 %v614, 96
    %v616 = vpop.permute.xlu0 %615
    %v617 = vsel %vm180, %v616, 0
    %619 = vmatprep.subr.mxu0 0.0
    %620 = vmatpush1.msra.mxu0 %v167
    %621 = vmatprep.subr.mxu0 0.0
    %622 = vmatpush1.msra.mxu0 %v168
    %623 = vmatprep.subr.mxu0 0.0
    %624 = vmatpush1.msra.mxu0 %v169
    %625 = vmatprep.subr.mxu0 0.0
    %626 = vmatpush1.msra.mxu0 %v170
    %627 = vmatprep.subr.mxu0 0.0
    %628 = vmatpush1.msra.mxu0 0.0
    %629 = vmatprep.subr.mxu0 0.0
    %630 = vmatpush1.msra.mxu0 0.0
    %631 = vmatprep.subr.mxu0 0.0
    %632 = vmatpush1.msra.mxu0 0.0
    %633 = vmatprep.subr.mxu0 0.0
    %634 = vmatpush1.msra.mxu0 0.0
    %635 = vmatprep.subr.mxu0 0.0
    %636 = vmatpush1.msra.mxu0 0.0
    %637 = vmatprep.subr.mxu0 0.0
    %638 = vmatpush1.msra.mxu0 0.0
    %639 = vmatprep.subr.mxu0 0.0
    %640 = vmatpush1.msra.mxu0 0.0
    %641 = vmatprep.subr.mxu0 0.0
    %642 = vmatpush1.msra.mxu0 0.0
    %643 = vmatprep.subr.mxu0 0.0
    %644 = vmatpush1.msra.mxu0 0.0
    %645 = vmatprep.subr.mxu0 0.0
    %646 = vmatpush1.msra.mxu0 0.0
    %647 = vmatprep.subr.mxu0 0.0
    %648 = vmatpush1.msra.mxu0 0.0
    %649 = vmatprep.subr.mxu0 0.0
    %650 = vmatpush1.msra.mxu0 0.0
    %651 = vmatprep.subr.mxu0 0.0
    %652 = vmatpush1.msra.mxu0 0.0
    %653 = vmatprep.subr.mxu0 0.0
    %654 = vmatpush1.msra.mxu0 0.0
    %655 = vmatprep.subr.mxu0 0.0
    %656 = vmatpush1.msra.mxu0 0.0
    %657 = vmatprep.subr.mxu0 0.0
    %658 = vmatpush1.msra.mxu0 0.0
    %659 = vmatprep.subr.mxu0 0.0
    %660 = vmatpush1.msra.mxu0 0.0
    %661 = vmatprep.subr.mxu0 0.0
    %662 = vmatpush1.msra.mxu0 0.0
    %663 = vmatprep.subr.mxu0 0.0
    %664 = vmatpush1.msra.mxu0 0.0
    %665 = vmatprep.subr.mxu0 0.0
    %666 = vmatpush1.msra.mxu0 0.0
    %667 = vmatprep.subr.mxu0 0.0
    %668 = vmatpush1.msra.mxu0 0.0
    %669 = vmatprep.subr.mxu0 0.0
    %670 = vmatpush1.msra.mxu0 0.0
    %671 = vmatprep.subr.mxu0 0.0
    %672 = vmatpush1.msra.mxu0 0.0
    %673 = vmatprep.subr.mxu0 0.0
    %674 = vmatpush1.msra.mxu0 0.0
    %675 = vmatprep.subr.mxu0 0.0
    %676 = vmatpush1.msra.mxu0 0.0
    %677 = vmatprep.subr.mxu0 0.0
    %678 = vmatpush1.msra.mxu0 0.0
    %679 = vmatprep.subr.mxu0 0.0
    %680 = vmatpush1.msra.mxu0 0.0
    %681 = vmatprep.subr.mxu0 0.0
    %682 = vmatpush1.msra.mxu0 0.0
    %683 = vmatprep.mubr.f32.mxu0 0.0
    %684 = vmatmul.mubr.f32.gmra.mrb[0].mxu0 %v617
    %v685 = vpop.f32.mrb[0].mxu0
    %v686 = vadd.f32 0.0, %v685
    %v687 = vpop.f32.mrb[0].mxu0
    %688 = vdwg.mxu0
    %v690 = vrot.slane %v686, 1
    %v693 = vadd.f32 %v611, %v686
    %v694 = vadd.f32 %v612, %v690
    %v695 = vmul.f32 %v693, 0.5
    %v696 = vmul.f32 %v694, 0.5
    %v697 = vtanh.pop %v695
    %v698 = vtanh.pop %v696
    %v699 = vadd.f32 %v697, 1.0
    %v700 = vadd.f32 %v698, 1.0
    %v701 = vmul.f32 %v699, 0.5
    %v702 = vmul.f32 %v700, 0.5
    %v703 = vadd.f32 %v686, %v269
    %v705 = vrot.slane %v703, 1
    %706 = vrot.lane.b32.xlu0 %v703, 64
    %v707 = vpop.permute.xlu0 %706
    %708 = vrot.lane.b32.xlu0 %v705, 64
    %v709 = vpop.permute.xlu0 %708
    %v712 = vmul.f32 %v701, %v707
    %v713 = vmul.f32 %v702, %v709
    %716 = vrot.lane.b32.xlu0 %v712, 64
    %v717 = vpop.permute.xlu0 %716
    %718 = vrot.lane.b32.xlu0 %v713, 64
    %v719 = vpop.permute.xlu0 %718
    %v722 = vadd.f32 %v611, %v717
    %v723 = vadd.f32 %v612, %v719
    %v724 = vtanh.pop %v722
    %v725 = vtanh.pop %v723
    %v726 = vsub.f32 1.0, %v701
    %v727 = vsub.f32 1.0, %v702
    %730 = vrot.lane.b32.xlu0 %v724, 96
    %v731 = vpop.permute.xlu0 %730
    %732 = vrot.lane.b32.xlu0 %v725, 96
    %v733 = vpop.permute.xlu0 %732
    %v736 = vmul.f32 %v726, %v731
    %v737 = vmul.f32 %v727, %v733
    %v738 = vmul.f32 %v701, %v599
    %v739 = vmul.f32 %v702, %v600
    %v740 = vadd.f32 %v736, %v738
    %v741 = vadd.f32 %v737, %v739
    %744 = vrot.lane.b32.xlu0 %v740, 96
    %v745 = vpop.permute.xlu0 %744
    %746 = vrot.lane.b32.xlu0 %v741, 96
    %v747 = vpop.permute.xlu0 %746
    %750 = vst.msk [vmem:[#allocation10 + $0x3] sm:$0x1] %vm325, %v745
    %751 = vst.msk [vmem:[#allocation10 + $0xb] sm:$0x1] %vm325, %v747
    %v752 = vld [vmem:[#allocation2 + $0x4] sm:$0x1]
    %v753 = vld [vmem:[#allocation2 + $0xc] sm:$0x1]
    %v754 = vrot.slane %v741, 7
    %v755 = vsel %vm331, %v754, %v740
    %756 = vrot.lane.b32.xlu0 %v755, 96
    %v757 = vpop.permute.xlu0 %756
    %v758 = vsel %vm180, %v757, 0
    %760 = vmatprep.subr.mxu0 0.0
    %761 = vmatpush1.msra.mxu0 %v167
    %762 = vmatprep.subr.mxu0 0.0
    %763 = vmatpush1.msra.mxu0 %v168
    %764 = vmatprep.subr.mxu0 0.0
    %765 = vmatpush1.msra.mxu0 %v169
    %766 = vmatprep.subr.mxu0 0.0
    %767 = vmatpush1.msra.mxu0 %v170
    %768 = vmatprep.subr.mxu0 0.0
    %769 = vmatpush1.msra.mxu0 0.0
    %770 = vmatprep.subr.mxu0 0.0
    %771 = vmatpush1.msra.mxu0 0.0
    %772 = vmatprep.subr.mxu0 0.0
    %773 = vmatpush1.msra.mxu0 0.0
    %774 = vmatprep.subr.mxu0 0.0
    %775 = vmatpush1.msra.mxu0 0.0
    %776 = vmatprep.subr.mxu0 0.0
    %777 = vmatpush1.msra.mxu0 0.0
    %778 = vmatprep.subr.mxu0 0.0
    %779 = vmatpush1.msra.mxu0 0.0
    %780 = vmatprep.subr.mxu0 0.0
    %781 = vmatpush1.msra.mxu0 0.0
    %782 = vmatprep.subr.mxu0 0.0
    %783 = vmatpush1.msra.mxu0 0.0
    %784 = vmatprep.subr.mxu0 0.0
    %785 = vmatpush1.msra.mxu0 0.0
    %786 = vmatprep.subr.mxu0 0.0
    %787 = vmatpush1.msra.mxu0 0.0
    %788 = vmatprep.subr.mxu0 0.0
    %789 = vmatpush1.msra.mxu0 0.0
    %790 = vmatprep.subr.mxu0 0.0
    %791 = vmatpush1.msra.mxu0 0.0
    %792 = vmatprep.subr.mxu0 0.0
    %793 = vmatpush1.msra.mxu0 0.0
    %794 = vmatprep.subr.mxu0 0.0
    %795 = vmatpush1.msra.mxu0 0.0
    %796 = vmatprep.subr.mxu0 0.0
    %797 = vmatpush1.msra.mxu0 0.0
    %798 = vmatprep.subr.mxu0 0.0
    %799 = vmatpush1.msra.mxu0 0.0
    %800 = vmatprep.subr.mxu0 0.0
    %801 = vmatpush1.msra.mxu0 0.0
    %802 = vmatprep.subr.mxu0 0.0
    %803 = vmatpush1.msra.mxu0 0.0
    %804 = vmatprep.subr.mxu0 0.0
    %805 = vmatpush1.msra.mxu0 0.0
    %806 = vmatprep.subr.mxu0 0.0
    %807 = vmatpush1.msra.mxu0 0.0
    %808 = vmatprep.subr.mxu0 0.0
    %809 = vmatpush1.msra.mxu0 0.0
    %810 = vmatprep.subr.mxu0 0.0
    %811 = vmatpush1.msra.mxu0 0.0
    %812 = vmatprep.subr.mxu0 0.0
    %813 = vmatpush1.msra.mxu0 0.0
    %814 = vmatprep.subr.mxu0 0.0
    %815 = vmatpush1.msra.mxu0 0.0
    %816 = vmatprep.subr.mxu0 0.0
    %817 = vmatpush1.msra.mxu0 0.0
    %818 = vmatprep.subr.mxu0 0.0
    %819 = vmatpush1.msra.mxu0 0.0
    %820 = vmatprep.subr.mxu0 0.0
    %821 = vmatpush1.msra.mxu0 0.0
    %822 = vmatprep.subr.mxu0 0.0
    %823 = vmatpush1.msra.mxu0 0.0
    %824 = vmatprep.mubr.f32.mxu0 0.0
    %825 = vmatmul.mubr.f32.gmra.mrb[0].mxu0 %v758
    %v826 = vpop.f32.mrb[0].mxu0
    %v827 = vadd.f32 0.0, %v826
    %v828 = vpop.f32.mrb[0].mxu0
    %829 = vdwg.mxu0
    %v831 = vrot.slane %v827, 1
    %v834 = vadd.f32 %v752, %v827
    %v835 = vadd.f32 %v753, %v831
    %v836 = vmul.f32 %v834, 0.5
    %v837 = vmul.f32 %v835, 0.5
    %v838 = vtanh.pop %v836
    %v839 = vtanh.pop %v837
    %v840 = vadd.f32 %v838, 1.0
    %v841 = vadd.f32 %v839, 1.0
    %v842 = vmul.f32 %v840, 0.5
    %v843 = vmul.f32 %v841, 0.5
    %v844 = vadd.f32 %v827, %v269
    %v846 = vrot.slane %v844, 1
    %847 = vrot.lane.b32.xlu0 %v844, 64
    %v848 = vpop.permute.xlu0 %847
    %849 = vrot.lane.b32.xlu0 %v846, 64
    %v850 = vpop.permute.xlu0 %849
    %v853 = vmul.f32 %v842, %v848
    %v854 = vmul.f32 %v843, %v850
    %857 = vrot.lane.b32.xlu0 %v853, 64
    %v858 = vpop.permute.xlu0 %857
    %859 = vrot.lane.b32.xlu0 %v854, 64
    %v860 = vpop.permute.xlu0 %859
    %v863 = vadd.f32 %v752, %v858
    %v864 = vadd.f32 %v753, %v860
    %v865 = vtanh.pop %v863
    %v866 = vtanh.pop %v864
    %v867 = vsub.f32 1.0, %v842
    %v868 = vsub.f32 1.0, %v843
    %871 = vrot.lane.b32.xlu0 %v865, 96
    %v872 = vpop.permute.xlu0 %871
    %873 = vrot.lane.b32.xlu0 %v866, 96
    %v874 = vpop.permute.xlu0 %873
    %v877 = vmul.f32 %v867, %v872
    %v878 = vmul.f32 %v868, %v874
    %v879 = vmul.f32 %v842, %v740
    %v880 = vmul.f32 %v843, %v741
    %v881 = vadd.f32 %v877, %v879
    %v882 = vadd.f32 %v878, %v880
    %885 = vrot.lane.b32.xlu0 %v881, 96
    %v886 = vpop.permute.xlu0 %885
    %887 = vrot.lane.b32.xlu0 %v882, 96
    %v888 = vpop.permute.xlu0 %887
    %891 = vst.msk [vmem:[#allocation10 + $0x4] sm:$0x1] %vm325, %v886
    %892 = vst.msk [vmem:[#allocation10 + $0xc] sm:$0x1] %vm325, %v888
    %v893 = vld [vmem:[#allocation2 + $0x5] sm:$0x1]
    %v894 = vld [vmem:[#allocation2 + $0xd] sm:$0x1]
    %v895 = vrot.slane %v882, 7
    %v896 = vsel %vm331, %v895, %v881
    %897 = vrot.lane.b32.xlu0 %v896, 96
    %v898 = vpop.permute.xlu0 %897
    %v899 = vsel %vm180, %v898, 0
    %901 = vmatprep.subr.mxu0 0.0
    %902 = vmatpush1.msra.mxu0 %v167
    %903 = vmatprep.subr.mxu0 0.0
    %904 = vmatpush1.msra.mxu0 %v168
    %905 = vmatprep.subr.mxu0 0.0
    %906 = vmatpush1.msra.mxu0 %v169
    %907 = vmatprep.subr.mxu0 0.0
    %908 = vmatpush1.msra.mxu0 %v170
    %909 = vmatprep.subr.mxu0 0.0
    %910 = vmatpush1.msra.mxu0 0.0
    %911 = vmatprep.subr.mxu0 0.0
    %912 = vmatpush1.msra.mxu0 0.0
    %913 = vmatprep.subr.mxu0 0.0
    %914 = vmatpush1.msra.mxu0 0.0
    %915 = vmatprep.subr.mxu0 0.0
    %916 = vmatpush1.msra.mxu0 0.0
    %917 = vmatprep.subr.mxu0 0.0
    %918 = vmatpush1.msra.mxu0 0.0
    %919 = vmatprep.subr.mxu0 0.0
    %920 = vmatpush1.msra.mxu0 0.0
    %921 = vmatprep.subr.mxu0 0.0
    %922 = vmatpush1.msra.mxu0 0.0
    %923 = vmatprep.subr.mxu0 0.0
    %924 = vmatpush1.msra.mxu0 0.0
    %925 = vmatprep.subr.mxu0 0.0
    %926 = vmatpush1.msra.mxu0 0.0
    %927 = vmatprep.subr.mxu0 0.0
    %928 = vmatpush1.msra.mxu0 0.0
    %929 = vmatprep.subr.mxu0 0.0
    %930 = vmatpush1.msra.mxu0 0.0
    %931 = vmatprep.subr.mxu0 0.0
    %932 = vmatpush1.msra.mxu0 0.0
    %933 = vmatprep.subr.mxu0 0.0
    %934 = vmatpush1.msra.mxu0 0.0
    %935 = vmatprep.subr.mxu0 0.0
    %936 = vmatpush1.msra.mxu0 0.0
    %937 = vmatprep.subr.mxu0 0.0
    %938 = vmatpush1.msra.mxu0 0.0
    %939 = vmatprep.subr.mxu0 0.0
    %940 = vmatpush1.msra.mxu0 0.0
    %941 = vmatprep.subr.mxu0 0.0
    %942 = vmatpush1.msra.mxu0 0.0
    %943 = vmatprep.subr.mxu0 0.0
    %944 = vmatpush1.msra.mxu0 0.0
    %945 = vmatprep.subr.mxu0 0.0
    %946 = vmatpush1.msra.mxu0 0.0
    %947 = vmatprep.subr.mxu0 0.0
    %948 = vmatpush1.msra.mxu0 0.0
    %949 = vmatprep.subr.mxu0 0.0
    %950 = vmatpush1.msra.mxu0 0.0
    %951 = vmatprep.subr.mxu0 0.0
    %952 = vmatpush1.msra.mxu0 0.0
    %953 = vmatprep.subr.mxu0 0.0
    %954 = vmatpush1.msra.mxu0 0.0
    %955 = vmatprep.subr.mxu0 0.0
    %956 = vmatpush1.msra.mxu0 0.0
    %957 = vmatprep.subr.mxu0 0.0
    %958 = vmatpush1.msra.mxu0 0.0
    %959 = vmatprep.subr.mxu0 0.0
    %960 = vmatpush1.msra.mxu0 0.0
    %961 = vmatprep.subr.mxu0 0.0
    %962 = vmatpush1.msra.mxu0 0.0
    %963 = vmatprep.subr.mxu0 0.0
    %964 = vmatpush1.msra.mxu0 0.0
    %965 = vmatprep.mubr.f32.mxu0 0.0
    %966 = vmatmul.mubr.f32.gmra.mrb[0].mxu0 %v899
    %v967 = vpop.f32.mrb[0].mxu0
    %v968 = vadd.f32 0.0, %v967
    %v969 = vpop.f32.mrb[0].mxu0
    %970 = vdwg.mxu0
    %v972 = vrot.slane %v968, 1
    %v975 = vadd.f32 %v893, %v968
    %v976 = vadd.f32 %v894, %v972
    %v977 = vmul.f32 %v975, 0.5
    %v978 = vmul.f32 %v976, 0.5
    %v979 = vtanh.pop %v977
    %v980 = vtanh.pop %v978
    %v981 = vadd.f32 %v979, 1.0
    %v982 = vadd.f32 %v980, 1.0
    %v983 = vmul.f32 %v981, 0.5
    %v984 = vmul.f32 %v982, 0.5
    %v985 = vadd.f32 %v968, %v269
    %v987 = vrot.slane %v985, 1
    %988 = vrot.lane.b32.xlu0 %v985, 64
    %v989 = vpop.permute.xlu0 %988
    %990 = vrot.lane.b32.xlu0 %v987, 64
    %v991 = vpop.permute.xlu0 %990
    %v994 = vmul.f32 %v983, %v989
    %v995 = vmul.f32 %v984, %v991
    %998 = vrot.lane.b32.xlu0 %v994, 64
    %v999 = vpop.permute.xlu0 %998
    %1000 = vrot.lane.b32.xlu0 %v995, 64
    %v1001 = vpop.permute.xlu0 %1000
    %v1004 = vadd.f32 %v893, %v999
    %v1005 = vadd.f32 %v894, %v1001
    %v1006 = vtanh.pop %v1004
    %v1007 = vtanh.pop %v1005
    %v1008 = vsub.f32 1.0, %v983
    %v1009 = vsub.f32 1.0, %v984
    %1012 = vrot.lane.b32.xlu0 %v1006, 96
    %v1013 = vpop.permute.xlu0 %1012
    %1014 = vrot.lane.b32.xlu0 %v1007, 96
    %v1015 = vpop.permute.xlu0 %1014
    %v1018 = vmul.f32 %v1008, %v1013
    %v1019 = vmul.f32 %v1009, %v1015
    %v1020 = vmul.f32 %v983, %v881
    %v1021 = vmul.f32 %v984, %v882
    %v1022 = vadd.f32 %v1018, %v1020
    %v1023 = vadd.f32 %v1019, %v1021
    %1026 = vrot.lane.b32.xlu0 %v1022, 96
    %v1027 = vpop.permute.xlu0 %1026
    %1028 = vrot.lane.b32.xlu0 %v1023, 96
    %v1029 = vpop.permute.xlu0 %1028
    %1032 = vst.msk [vmem:[#allocation10 + $0x5] sm:$0x1] %vm325, %v1027
    %1033 = vst.msk [vmem:[#allocation10 + $0xd] sm:$0x1] %vm325, %v1029
    %v1034 = vld [vmem:[#allocation2 + $0x6] sm:$0x1]
    %v1035 = vld [vmem:[#allocation2 + $0xe] sm:$0x1]
    %v1036 = vrot.slane %v1023, 7
    %v1037 = vsel %vm331, %v1036, %v1022
    %1038 = vrot.lane.b32.xlu0 %v1037, 96
    %v1039 = vpop.permute.xlu0 %1038
    %v1040 = vsel %vm180, %v1039, 0
    %1042 = vmatprep.subr.mxu0 0.0
    %1043 = vmatpush1.msra.mxu0 %v167
    %1044 = vmatprep.subr.mxu0 0.0
    %1045 = vmatpush1.msra.mxu0 %v168
    %1046 = vmatprep.subr.mxu0 0.0
    %1047 = vmatpush1.msra.mxu0 %v169
    %1048 = vmatprep.subr.mxu0 0.0
    %1049 = vmatpush1.msra.mxu0 %v170
    %1050 = vmatprep.subr.mxu0 0.0
    %1051 = vmatpush1.msra.mxu0 0.0
    %1052 = vmatprep.subr.mxu0 0.0
    %1053 = vmatpush1.msra.mxu0 0.0
    %1054 = vmatprep.subr.mxu0 0.0
    %1055 = vmatpush1.msra.mxu0 0.0
    %1056 = vmatprep.subr.mxu0 0.0
    %1057 = vmatpush1.msra.mxu0 0.0
    %1058 = vmatprep.subr.mxu0 0.0
    %1059 = vmatpush1.msra.mxu0 0.0
    %1060 = vmatprep.subr.mxu0 0.0
    %1061 = vmatpush1.msra.mxu0 0.0
    %1062 = vmatprep.subr.mxu0 0.0
    %1063 = vmatpush1.msra.mxu0 0.0
    %1064 = vmatprep.subr.mxu0 0.0
    %1065 = vmatpush1.msra.mxu0 0.0
    %1066 = vmatprep.subr.mxu0 0.0
    %1067 = vmatpush1.msra.mxu0 0.0
    %1068 = vmatprep.subr.mxu0 0.0
    %1069 = vmatpush1.msra.mxu0 0.0
    %1070 = vmatprep.subr.mxu0 0.0
    %1071 = vmatpush1.msra.mxu0 0.0
    %1072 = vmatprep.subr.mxu0 0.0
    %1073 = vmatpush1.msra.mxu0 0.0
    %1074 = vmatprep.subr.mxu0 0.0
    %1075 = vmatpush1.msra.mxu0 0.0
    %1076 = vmatprep.subr.mxu0 0.0
    %1077 = vmatpush1.msra.mxu0 0.0
    %1078 = vmatprep.subr.mxu0 0.0
    %1079 = vmatpush1.msra.mxu0 0.0
    %1080 = vmatprep.subr.mxu0 0.0
    %1081 = vmatpush1.msra.mxu0 0.0
    %1082 = vmatprep.subr.mxu0 0.0
    %1083 = vmatpush1.msra.mxu0 0.0
    %1084 = vmatprep.subr.mxu0 0.0
    %1085 = vmatpush1.msra.mxu0 0.0
    %1086 = vmatprep.subr.mxu0 0.0
    %1087 = vmatpush1.msra.mxu0 0.0
    %1088 = vmatprep.subr.mxu0 0.0
    %1089 = vmatpush1.msra.mxu0 0.0
    %1090 = vmatprep.subr.mxu0 0.0
    %1091 = vmatpush1.msra.mxu0 0.0
    %1092 = vmatprep.subr.mxu0 0.0
    %1093 = vmatpush1.msra.mxu0 0.0
    %1094 = vmatprep.subr.mxu0 0.0
    %1095 = vmatpush1.msra.mxu0 0.0
    %1096 = vmatprep.subr.mxu0 0.0
    %1097 = vmatpush1.msra.mxu0 0.0
    %1098 = vmatprep.subr.mxu0 0.0
    %1099 = vmatpush1.msra.mxu0 0.0
    %1100 = vmatprep.subr.mxu0 0.0
    %1101 = vmatpush1.msra.mxu0 0.0
    %1102 = vmatprep.subr.mxu0 0.0
    %1103 = vmatpush1.msra.mxu0 0.0
    %1104 = vmatprep.subr.mxu0 0.0
    %1105 = vmatpush1.msra.mxu0 0.0
    %1106 = vmatprep.mubr.f32.mxu0 0.0
    %1107 = vmatmul.mubr.f32.gmra.mrb[0].mxu0 %v1040
    %v1108 = vpop.f32.mrb[0].mxu0
    %v1109 = vadd.f32 0.0, %v1108
    %v1110 = vpop.f32.mrb[0].mxu0
    %1111 = vdwg.mxu0
    %v1113 = vrot.slane %v1109, 1
    %v1116 = vadd.f32 %v1034, %v1109
    %v1117 = vadd.f32 %v1035, %v1113
    %v1118 = vmul.f32 %v1116, 0.5
    %v1119 = vmul.f32 %v1117, 0.5
    %v1120 = vtanh.pop %v1118
    %v1121 = vtanh.pop %v1119
    %v1122 = vadd.f32 %v1120, 1.0
    %v1123 = vadd.f32 %v1121, 1.0
    %v1124 = vmul.f32 %v1122, 0.5
    %v1125 = vmul.f32 %v1123, 0.5
    %v1126 = vadd.f32 %v1109, %v269
    %v1128 = vrot.slane %v1126, 1
    %1129 = vrot.lane.b32.xlu0 %v1126, 64
    %v1130 = vpop.permute.xlu0 %1129
    %1131 = vrot.lane.b32.xlu0 %v1128, 64
    %v1132 = vpop.permute.xlu0 %1131
    %v1135 = vmul.f32 %v1124, %v1130
    %v1136 = vmul.f32 %v1125, %v1132
    %1139 = vrot.lane.b32.xlu0 %v1135, 64
    %v1140 = vpop.permute.xlu0 %1139
    %1141 = vrot.lane.b32.xlu0 %v1136, 64
    %v1142 = vpop.permute.xlu0 %1141
    %v1145 = vadd.f32 %v1034, %v1140
    %v1146 = vadd.f32 %v1035, %v1142
    %v1147 = vtanh.pop %v1145
    %v1148 = vtanh.pop %v1146
    %v1149 = vsub.f32 1.0, %v1124
    %v1150 = vsub.f32 1.0, %v1125
    %1153 = vrot.lane.b32.xlu0 %v1147, 96
    %v1154 = vpop.permute.xlu0 %1153
    %1155 = vrot.lane.b32.xlu0 %v1148, 96
    %v1156 = vpop.permute.xlu0 %1155
    %v1159 = vmul.f32 %v1149, %v1154
    %v1160 = vmul.f32 %v1150, %v1156
    %v1161 = vmul.f32 %v1124, %v1022
    %v1162 = vmul.f32 %v1125, %v1023
    %v1163 = vadd.f32 %v1159, %v1161
    %v1164 = vadd.f32 %v1160, %v1162
    %1167 = vrot.lane.b32.xlu0 %v1163, 96
    %v1168 = vpop.permute.xlu0 %1167
    %1169 = vrot.lane.b32.xlu0 %v1164, 96
    %v1170 = vpop.permute.xlu0 %1169
    %1173 = vst.msk [vmem:[#allocation10 + $0x6] sm:$0x1] %vm325, %v1168
    %1174 = vst.msk [vmem:[#allocation10 + $0xe] sm:$0x1] %vm325, %v1170
    %v1175 = vld [vmem:[#allocation2 + $0x7] sm:$0x1]
    %v1176 = vld [vmem:[#allocation2 + $0xf] sm:$0x1]
    %v1177 = vrot.slane %v1164, 7
    %v1178 = vsel %vm331, %v1177, %v1163
    %1179 = vrot.lane.b32.xlu0 %v1178, 96
    %v1180 = vpop.permute.xlu0 %1179
    %v1181 = vsel %vm180, %v1180, 0
    %1183 = vmatprep.subr.mxu0 0.0
    %1184 = vmatpush1.msra.mxu0 %v167
    %1185 = vmatprep.subr.mxu0 0.0
    %1186 = vmatpush1.msra.mxu0 %v168
    %1187 = vmatprep.subr.mxu0 0.0
    %1188 = vmatpush1.msra.mxu0 %v169
    %1189 = vmatprep.subr.mxu0 0.0
    %1190 = vmatpush1.msra.mxu0 %v170
    %1191 = vmatprep.subr.mxu0 0.0
    %1192 = vmatpush1.msra.mxu0 0.0
    %1193 = vmatprep.subr.mxu0 0.0
    %1194 = vmatpush1.msra.mxu0 0.0
    %1195 = vmatprep.subr.mxu0 0.0
    %1196 = vmatpush1.msra.mxu0 0.0
    %1197 = vmatprep.subr.mxu0 0.0
    %1198 = vmatpush1.msra.mxu0 0.0
    %1199 = vmatprep.subr.mxu0 0.0
    %1200 = vmatpush1.msra.mxu0 0.0
    %1201 = vmatprep.subr.mxu0 0.0
    %1202 = vmatpush1.msra.mxu0 0.0
    %1203 = vmatprep.subr.mxu0 0.0
    %1204 = vmatpush1.msra.mxu0 0.0
    %1205 = vmatprep.subr.mxu0 0.0
    %1206 = vmatpush1.msra.mxu0 0.0
    %1207 = vmatprep.subr.mxu0 0.0
    %1208 = vmatpush1.msra.mxu0 0.0
    %1209 = vmatprep.subr.mxu0 0.0
    %1210 = vmatpush1.msra.mxu0 0.0
    %1211 = vmatprep.subr.mxu0 0.0
    %1212 = vmatpush1.msra.mxu0 0.0
    %1213 = vmatprep.subr.mxu0 0.0
    %1214 = vmatpush1.msra.mxu0 0.0
    %1215 = vmatprep.subr.mxu0 0.0
    %1216 = vmatpush1.msra.mxu0 0.0
    %1217 = vmatprep.subr.mxu0 0.0
    %1218 = vmatpush1.msra.mxu0 0.0
    %1219 = vmatprep.subr.mxu0 0.0
    %1220 = vmatpush1.msra.mxu0 0.0
    %1221 = vmatprep.subr.mxu0 0.0
    %1222 = vmatpush1.msra.mxu0 0.0
    %1223 = vmatprep.subr.mxu0 0.0
    %1224 = vmatpush1.msra.mxu0 0.0
    %1225 = vmatprep.subr.mxu0 0.0
    %1226 = vmatpush1.msra.mxu0 0.0
    %1227 = vmatprep.subr.mxu0 0.0
    %1228 = vmatpush1.msra.mxu0 0.0
    %1229 = vmatprep.subr.mxu0 0.0
    %1230 = vmatpush1.msra.mxu0 0.0
    %1231 = vmatprep.subr.mxu0 0.0
    %1232 = vmatpush1.msra.mxu0 0.0
    %1233 = vmatprep.subr.mxu0 0.0
    %1234 = vmatpush1.msra.mxu0 0.0
    %1235 = vmatprep.subr.mxu0 0.0
    %1236 = vmatpush1.msra.mxu0 0.0
    %1237 = vmatprep.subr.mxu0 0.0
    %1238 = vmatpush1.msra.mxu0 0.0
    %1239 = vmatprep.subr.mxu0 0.0
    %1240 = vmatpush1.msra.mxu0 0.0
    %1241 = vmatprep.subr.mxu0 0.0
    %1242 = vmatpush1.msra.mxu0 0.0
    %1243 = vmatprep.subr.mxu0 0.0
    %1244 = vmatpush1.msra.mxu0 0.0
    %1245 = vmatprep.subr.mxu0 0.0
    %1246 = vmatpush1.msra.mxu0 0.0
    %1247 = vmatprep.mubr.f32.mxu0 0.0
    %1248 = vmatmul.mubr.f32.gmra.mrb[0].mxu0 %v1181
    %v1249 = vpop.f32.mrb[0].mxu0
    %v1250 = vadd.f32 0.0, %v1249
    %v1251 = vpop.f32.mrb[0].mxu0
    %1252 = vdwg.mxu0
    %v1254 = vrot.slane %v1250, 1
    %v1257 = vadd.f32 %v1175, %v1250
    %v1258 = vadd.f32 %v1176, %v1254
    %v1259 = vmul.f32 %v1257, 0.5
    %v1260 = vmul.f32 %v1258, 0.5
    %v1261 = vtanh.pop %v1259
    %v1262 = vtanh.pop %v1260
    %v1263 = vadd.f32 %v1261, 1.0
    %v1264 = vadd.f32 %v1262, 1.0
    %v1265 = vmul.f32 %v1263, 0.5
    %v1266 = vmul.f32 %v1264, 0.5
    %v1267 = vadd.f32 %v1250, %v269
    %v1269 = vrot.slane %v1267, 1
    %1270 = vrot.lane.b32.xlu0 %v1267, 64
    %v1271 = vpop.permute.xlu0 %1270
    %1272 = vrot.lane.b32.xlu0 %v1269, 64
    %v1273 = vpop.permute.xlu0 %1272
    %v1276 = vmul.f32 %v1265, %v1271
    %v1277 = vmul.f32 %v1266, %v1273
    %1280 = vrot.lane.b32.xlu0 %v1276, 64
    %v1281 = vpop.permute.xlu0 %1280
    %1282 = vrot.lane.b32.xlu0 %v1277, 64
    %v1283 = vpop.permute.xlu0 %1282
    %v1286 = vadd.f32 %v1175, %v1281
    %v1287 = vadd.f32 %v1176, %v1283
    %v1288 = vtanh.pop %v1286
    %v1289 = vtanh.pop %v1287
    %v1290 = vsub.f32 1.0, %v1265
    %v1291 = vsub.f32 1.0, %v1266
    %1294 = vrot.lane.b32.xlu0 %v1288, 96
    %v1295 = vpop.permute.xlu0 %1294
    %1296 = vrot.lane.b32.xlu0 %v1289, 96
    %v1297 = vpop.permute.xlu0 %1296
    %v1300 = vmul.f32 %v1290, %v1295
    %v1301 = vmul.f32 %v1291, %v1297
    %v1302 = vmul.f32 %v1265, %v1163
    %v1303 = vmul.f32 %v1266, %v1164
    %v1304 = vadd.f32 %v1300, %v1302
    %v1305 = vadd.f32 %v1301, %v1303
    %1308 = vrot.lane.b32.xlu0 %v1304, 96
    %v1309 = vpop.permute.xlu0 %1308
    %1310 = vrot.lane.b32.xlu0 %v1305, 96
    %v1311 = vpop.permute.xlu0 %1310
    %1314 = vst.msk [vmem:[#allocation10 + $0x7] sm:$0x1] %vm325, %v1309
    %1315 = vst.msk [vmem:[#allocation10 + $0xf] sm:$0x1] %vm325, %v1311
    %v1316 = vrot.slane %v1305, 7
    %v1317 = vsel %vm331, %v1316, %v1304
    %1318 = vrot.lane.b32.xlu0 %v1317, 96
    %v1319 = vpop.permute.xlu0 %1318
    %vm1321 = vcmask 254976
    %1322 = vst.msk [vmem:[#allocation3] sm:$0x3] %vm1321, %v1319
    // Predicated region
    $region38: #{tpu_custom_call.1} parent=1 // pred_check
      %p1323 = pneg %p65
    $region39: #{tpu_custom_call.1} parent=1 // pred_check_branch
      %1325 = sbr.rel (%p1323) target = $region41
    $region40: #{tpu_custom_call.1} parent=1 // pred_region
      %1326 = vst.msk [vmem:[#allocation11] sm:$0x3] %vm1321, %v1319
    $region41: #{tpu_custom_call.1} parent=1 // pred_fallthru
      _
    // Predicated region
    $region42: #{tpu_custom_call.1} parent=1 // pred_check
      _
    $region43: #{tpu_custom_call.1} parent=1 // pred_check_branch
      %1328 = sbr.rel (0) target = $region45
    $region44: #{tpu_custom_call.1} parent=1 // pred_region
      %s1330 = ssub.s32 256, 256
      %1331 = vsyncadd [#allocation6], %s1330
      %s1332 = sshll.u32 [#allocation10], 4
      %s1333 = int_to_ptr.vmem [resolvable:$true] %s1332
      %1338 = dma.vmem_to_hbm [thread:$0]  %s1333, 256, %s5, [#allocation6], 128, 128, 8
    $region45: #{tpu_custom_call.1} parent=1 // pred_fallthru
      _
    // Predicated region
    $region46: #{tpu_custom_call.1} parent=1 // pred_check
      _
    $region47: #{tpu_custom_call.1} parent=1 // pred_check_branch
      %1340 = sbr.rel (0) target = $region49
    $region48: #{tpu_custom_call.1} parent=1 // pred_region
      %s1342 = ssub.s32 32, 32
      %1343 = vsyncadd [#allocation12], %s1342
      %s1345 = sshll.u32 [#allocation11], 4
      %s1346 = int_to_ptr.vmem [resolvable:$true] %s1345
      %1348 = dma.vmem_to_hbm [thread:$0]  %s1346, 32, %s6, [#allocation12]
    $region49: #{tpu_custom_call.1} parent=1 // pred_fallthru
      _
    // Predicated region
    $region50: #{tpu_custom_call.1} parent=1 // pred_check
      _
    $region51: #{tpu_custom_call.1} parent=1 // pred_check_branch
      %1350 = sbr.rel (0) target = $region53
    $region52: #{tpu_custom_call.1} parent=1 // pred_region
      %1351 = dma.done [#allocation6], 256
    $region53: #{tpu_custom_call.1} parent=1 // pred_fallthru
      _
    // Predicated region
    $region54: #{tpu_custom_call.1} parent=1 // pred_check
      _
    $region55: #{tpu_custom_call.1} parent=1 // pred_check_branch
      %1353 = sbr.rel (0) target = $region57
    $region56: #{tpu_custom_call.1} parent=1 // pred_region
      %1354 = dma.done [#allocation12], 32
    $region57: #{tpu_custom_call.1} parent=1 // pred_fallthru
      _
    %1355 = vsyncpa [#allocation5], 1
    %1356 = vsyncpa [#allocation8], 1
    %1357 = vsyncpa [#allocation6], 1
    %1358 = vsyncpa [#allocation12], 1

</llo_original>
